<compile_context>
chip_gen: v7x
topology: tpu7x:2x2x1
jax: 0.10.0
libtpu: 0.0.40
codegen_flags: <defaults>
</compile_context>

<pallas_src>
import jax
import jax.numpy as jnp
from jax.experimental import pallas as pl
from jax.experimental.pallas import tpu as pltpu


def _round_up(n, m):
    return ((n + m - 1) // m) * m


def _multi_gcn_time_kernel(x_ref, sup_ref, w_ref, b_ref, out_ref, acc_ref):
    # x_ref  : (Mblk, K)        stacked batch*node rows, lanes = (c*T + t), K = pad(Cin*T, 128)
    # sup_ref: (S, Mblk, Mblk)  block-diagonal supports (one adjacency block per sample)
    # w_ref  : (P, K, N)        fused concat + (1,Kt)-conv weights, P = order*S + 1,
    #                           N = pad(Cout*T_out, 128)
    # b_ref  : (1, N)           bias (repeated over T_out, zero-padded), f32
    # out_ref: (Mblk, N)
    # acc_ref: (Mblk, N)        f32 VMEM accumulator scratch
    S = sup_ref.shape[0]
    P = w_ref.shape[0]
    order = (P - 1) // S

    x0 = x_ref[...]                                           # (Mblk, K)
    # piece 0 (identity term of the channel concat) + one bias broadcast per block
    acc_ref[...] = (jnp.dot(x0, w_ref[0], preferred_element_type=jnp.float32)
                    + b_ref[...])
    p = 1
    for s in range(S):                                        # static unroll (S, order tiny)
        a = sup_ref[s]                                        # (Mblk, Mblk) block-diag support
        xk = x0
        for _ in range(order):
            # graph diffusion: one (Mblk,Mblk)@(Mblk,K) MXU matmul for the whole batch block
            xk = jnp.dot(a, xk, preferred_element_type=jnp.float32).astype(x0.dtype)
            # fused channel-mix + temporal conv for this piece: one matmul, batch stacked in M
            acc_ref[...] += jnp.dot(xk, w_ref[p], preferred_element_type=jnp.float32)
            p += 1
    out_ref[...] = acc_ref[...].astype(out_ref.dtype)


def _vmem_estimate(bb, V, K, N, S, P, in_bytes, out_bytes):
    """Rough per-step VMEM footprint (BlockSpec double-buffers every operand)."""
    Mblk = bb * V
    x_blk = Mblk * K * in_bytes
    out_blk = Mblk * N * out_bytes
    sup_blk = S * Mblk * Mblk * in_bytes
    w_blk = P * K * N * in_bytes
    b_blk = N * 4
    acc = Mblk * N * 4
    return 2 * (x_blk + out_blk + sup_blk + w_blk + b_blk) + acc


def _auto_batch_block(B, V, K, N, S, P, in_bytes, out_bytes):
    budget = 24 * 1024 * 1024            # v7x-safe scoped-VMEM budget (32 MiB default scope)
    cands = [bb for bb in range(1, B + 1)
             if B % bb == 0 and ((bb * V) % 8 == 0 or bb == B)]
    best = 1
    for bb in cands:
        # cap Mblk so the block-diagonal support stays small, stay inside the budget
        if bb * V <= 512 and _vmem_estimate(bb, V, K, N, S, P, in_bytes, out_bytes) <= budget:
            best = bb
    # prefer >=2 grid steps (v7x has 2 TensorCores) if a smaller block still fills the MXU M dim
    if best == B and B > 1:
        for bb in sorted(cands, reverse=True):
            if bb < B and bb * V >= 128 and \
               _vmem_estimate(bb, V, K, N, S, P, in_bytes, out_bytes) <= budget:
                best = bb
                break
    return best


def multi_gcn_time_forward(x, supports, weight, bias, *, order=2,
                           batch_block=None, compute_dtype=None):
    """x: (B, c_in, V, T); supports: list of S (V, V) matrices;
    weight: (c_out, C_total, Kt) with C_total = (order*S+1)*c_in (the Conv2d
    weight with its size-1 height dim squeezed); bias: (c_out,).
    Returns (B, c_out, V, T - Kt + 1), matching the PyTorch module (eval mode).
    compute_dtype: dtype of the MXU operands (e.g. jnp.bfloat16); accumulation
    is always float32."""
    B, Cin, V, T = x.shape
    S = len(supports)
    P = order * S + 1
    Cout, Ctot, Kt = weight.shape
    assert Ctot == P * Cin, "conv weight channels must equal (order*S+1)*c_in"
    T_out = T - Kt + 1
    CinT = Cin * T
    Nout = Cout * T_out
    K = _round_up(CinT, 128)              # lane-pad input feature dim (MXU K)
    N = _round_up(Nout, 128)              # lane-pad output dim -> unmasked stores

    if compute_dtype is None:
        compute_dtype = x.dtype
    cdt = jnp.dtype(compute_dtype)
    out_dtype = x.dtype
    in_bytes = cdt.itemsize
    out_bytes = jnp.dtype(out_dtype).itemsize

    if batch_block is None:
        batch_block = _auto_batch_block(B, V, K, N, S, P, in_bytes, out_bytes)
    assert B % batch_block == 0, "batch_block must divide the batch size"
    if batch_block != B and (batch_block * V) % 8 != 0:
        raise ValueError("batch_block * num_nodes must be a multiple of 8 "
                         "(sublane tiling) unless batch_block == batch size")
    Mblk = batch_block * V

    # --- layout plumbing (outside the kernel) ---------------------------------
    # stacked node-first rows (b outer, v inner), lanes = (c*T + t), zero-padded to K
    x_nf = jnp.transpose(x, (0, 2, 1, 3)).reshape(B * V, CinT).astype(cdt)
    x_stk = jnp.pad(x_nf, ((0, 0), (0, K - CinT)))

    # block-diagonal supports so one matmul diffuses the whole batch block
    sup = jnp.stack(supports, axis=0).astype(cdt)                     # (S, V, V)
    if batch_block > 1:
        eye_b = jnp.eye(batch_block, dtype=cdt)
        sup_bd = jnp.einsum("bc,swv->sbwcv", eye_b, sup).reshape(S, Mblk, Mblk)
    else:
        sup_bd = sup

    # --- fuse concat + Conv2d(1, Kt) into one weight slab per piece -----------
    # Wbig[p, c*T + tt, o*T_out + t] = weight[o, p*Cin + c, tt - t]  (0 <= tt-t < Kt)
    Wr = weight.reshape(Cout, P, Cin, Kt)
    tt = jnp.arange(T)
    to = jnp.arange(T_out)
    kk = jnp.arange(Kt)
    Msel = (tt[:, None, None] == (to[None, None, :] + kk[None, :, None])).astype(weight.dtype)
    Wbig = jnp.einsum("opck,tkm->pctom", Wr, Msel).reshape(P, CinT, Nout)
    Wbig = jnp.pad(Wbig.astype(cdt), ((0, 0), (0, K - CinT), (0, N - Nout)))
    bias_p = jnp.pad(jnp.repeat(bias, T_out), (0, N - Nout)).reshape(1, N).astype(jnp.float32)

    # --- grid over batch blocks ------------------------------------------------
    grid = (B // batch_block,)
    est = _vmem_estimate(batch_block, V, K, N, S, P, in_bytes, out_bytes)
    vmem_limit = int(min(max(2 * est, 32 * 1024 * 1024), 64 * 1024 * 1024))

    out_flat = pl.pallas_call(
        _multi_gcn_time_kernel,
        out_shape=jax.ShapeDtypeStruct((B * V, N), out_dtype),
        grid_spec=pltpu.PrefetchScalarGridSpec(
            num_scalar_prefetch=0,
            grid=grid,
            in_specs=[
                pl.BlockSpec((Mblk, K), lambda i: (i, 0)),
                pl.BlockSpec((S, Mblk, Mblk), lambda i: (0, 0, 0)),
                pl.BlockSpec((P, K, N), lambda i: (0, 0, 0)),
                pl.BlockSpec((1, N), lambda i: (0, 0)),
            ],
            out_specs=pl.BlockSpec((Mblk, N), lambda i: (i, 0)),
            scratch_shapes=[pltpu.VMEM((Mblk, N), jnp.float32)],
        ),
        compiler_params=pltpu.CompilerParams(
            dimension_semantics=("parallel",),
            vmem_limit_bytes=vmem_limit,
        ),
    )(x_stk, sup_bd, Wbig, bias_p)

    # slice lane padding, then cheap layout plumbing back to PyTorch's (B, Cout, V, T_out)
    return out_flat[:, :Nout].reshape(B, V, Cout, T_out).transpose(0, 2, 1, 3)


def _reference(x, supports, weight, bias, *, order=2):
    """Pure-JAX mirror of the PyTorch multi_gcn_time.forward (eval mode)."""
    out = [x]
    for a in supports:
        x1 = jnp.einsum("wv,bcvt->bcwt", a, x)       # nconv(x, a) == A @ x over nodes
        out.append(x1)
        for _ in range(2, order + 1):
            x2 = jnp.einsum("wv,bcvt->bcwt", a, x1)
            out.append(x2)
            x1 = x2
    h = jnp.concatenate(out, axis=1)                 # (B, Ctot, V, T)
    Kt = weight.shape[-1]
    T = x.shape[-1]
    T_out = T - Kt + 1
    res = bias[None, :, None, None]
    for kt in range(Kt):
        res = res + jnp.einsum("oc,bcvt->bovt", weight[..., kt], h[..., kt:kt + T_out])
    return res


if __name__ == "__main__":
    # Small deterministic problem consistent with the module's defaults.
    B, Cin, Cout = 2, 4, 8          # batch, c_in, c_out
    V, T, Kt = 16, 8, 3             # num_nodes, tem_size, temporal kernel
    support_len, order = 3, 2
    Ctot = (order * support_len + 1) * Cin

    key = jax.random.PRNGKey(0)
    kx, ks, kw, kb = jax.random.split(key, 4)

    x = jax.random.normal(kx, (B, Cin, V, T), dtype=jnp.float32)
    sup_raw = jax.random.uniform(ks, (support_len, V, V), jnp.float32)
    supports = [sup_raw[i] / jnp.sum(sup_raw[i], axis=1, keepdims=True)
                for i in range(support_len)]                      # row-normalized adjacencies

    bound = 1.0 / (Ctot * Kt) ** 0.5                              # Conv2d default-style init
    weight = jax.random.uniform(kw, (Cout, Ctot, Kt), jnp.float32, -bound, bound)
    bias = jax.random.uniform(kb, (Cout,), jnp.float32, -bound, bound)

    ref = _reference(x, supports, weight, bias, order=order)

    # float32 MXU operands: tight numerical check against the pure-JAX reference
    out = multi_gcn_time_forward(x, supports, weight, bias, order=order)
    out = jax.block_until_ready(out)
    assert out.shape == (B, Cout, V, T - Kt + 1)
    err = float(jnp.max(jnp.abs(out - ref)))
    assert jnp.allclose(out, ref, atol=1e-4, rtol=1e-4), err

    # bf16 MXU operands / f32 accumulation (full-rate MXU path): loose tolerance,
    # the order-2 diffusion chain compounds bf16 rounding.
    out_bf = multi_gcn_time_forward(x, supports, weight, bias, order=order,
                                    compute_dtype=jnp.bfloat16)
    out_bf = jax.block_until_ready(out_bf)
    err_bf = float(jnp.max(jnp.abs(out_bf - ref)))
    assert jnp.allclose(out_bf, ref, atol=1e-1, rtol=1e-1), err_bf

    print("KERNEL_OK")
</pallas_src>

<mosaic_0001>
module attributes {stable_mosaic.version = 11 : i64} {
  func.func @_multi_gcn_time_kernel(%arg0: i32, %arg1: memref<32x128xf32, #tpu.memory_space<vmem>>, %arg2: memref<3x32x32xf32, #tpu.memory_space<vmem>>, %arg3: memref<7x128x128xf32, #tpu.memory_space<vmem>>, %arg4: memref<1x128xf32, #tpu.memory_space<vmem>>, %arg5: memref<32x128xf32, #tpu.memory_space<vmem>>, %arg6: memref<32x128xf32, #tpu.memory_space<vmem>>) attributes {dimension_semantics = [#tpu.dimension_semantics<parallel>], iteration_bounds = array<i64: 1>, scalar_prefetch = 0 : i64, scratch_operands = 1 : i64, tpu.core_type = #tpu.core_type<tc>, window_params = [{transform_indices = @transform_0, window_bounds = array<i64: 32, 128>}, {pipeline_mode = #tpu.pipeline_mode<synchronous>, transform_indices = @transform_1, window_bounds = array<i64: 3, 32, 32>}, {pipeline_mode = #tpu.pipeline_mode<synchronous>, transform_indices = @transform_2, window_bounds = array<i64: 7, 128, 128>}, {pipeline_mode = #tpu.pipeline_mode<synchronous>, transform_indices = @transform_3, window_bounds = array<i64: 1, 128>}, {transform_indices = @transform_4, window_bounds = array<i64: 32, 128>}]} {
    %c0 = arith.constant 0 : index
    %c0_0 = arith.constant 0 : index
    %0 = vector.load %arg1[%c0, %c0_0] : memref<32x128xf32, #tpu.memory_space<vmem>>, vector<32x128xf32>
    %c0_1 = arith.constant 0 : index
    %c0_2 = arith.constant 0 : index
    %c0_3 = arith.constant 0 : index
    %1 = vector.load %arg3[%c0_1, %c0_2, %c0_3] : memref<7x128x128xf32, #tpu.memory_space<vmem>>, vector<1x128x128xf32>
    %2 = vector.shape_cast %1 : vector<1x128x128xf32> to vector<128x128xf32>
    %cst = arith.constant dense<0.000000e+00> : vector<32x128xf32>
    %3 = tpu.matmul %0, %2, %cst {dimension_numbers = #tpu.dot_dimension_numbers<[1], [0], [0], [1], [0, 0, 1, 1], [], []>} : vector<32x128xf32>, vector<128x128xf32>, vector<32x128xf32> -> vector<32x128xf32>
    %c0_4 = arith.constant 0 : index
    %c0_5 = arith.constant 0 : index
    %4 = vector.load %arg4[%c0_4, %c0_5] : memref<1x128xf32, #tpu.memory_space<vmem>>, vector<1x128xf32>
    %5 = vector.broadcast %4 : vector<1x128xf32> to vector<32x128xf32>
    %6 = arith.addf %3, %5 : vector<32x128xf32>
    %c0_6 = arith.constant 0 : index
    %c0_7 = arith.constant 0 : index
    %7 = vector.load %arg6[%c0_6, %c0_7] : memref<32x128xf32, #tpu.memory_space<vmem>>, vector<32x128xf32>
    tpu.vector_store %arg6[%c0_6, %c0_7], %6 {strides = array<i32>} : memref<32x128xf32, #tpu.memory_space<vmem>>, vector<32x128xf32>,
    %c0_8 = arith.constant 0 : index
    %c0_9 = arith.constant 0 : index
    %c0_10 = arith.constant 0 : index
    %8 = vector.load %arg2[%c0_8, %c0_9, %c0_10] : memref<3x32x32xf32, #tpu.memory_space<vmem>>, vector<1x32x32xf32>
    %9 = vector.shape_cast %8 : vector<1x32x32xf32> to vector<32x32xf32>
    %cst_11 = arith.constant dense<0.000000e+00> : vector<32x128xf32>
    %10 = tpu.matmul %9, %0, %cst_11 {dimension_numbers = #tpu.dot_dimension_numbers<[1], [0], [0], [1], [0, 0, 1, 1], [], []>} : vector<32x32xf32>, vector<32x128xf32>, vector<32x128xf32> -> vector<32x128xf32>
    %c0_12 = arith.constant 0 : index
    %c0_13 = arith.constant 0 : index
    %11 = vector.load %arg6[%c0_12, %c0_13] : memref<32x128xf32, #tpu.memory_space<vmem>>, vector<32x128xf32>
    %c1 = arith.constant 1 : index
    %c0_14 = arith.constant 0 : index
    %c0_15 = arith.constant 0 : index
    %12 = vector.load %arg3[%c1, %c0_14, %c0_15] : memref<7x128x128xf32, #tpu.memory_space<vmem>>, vector<1x128x128xf32>
    %13 = vector.shape_cast %12 : vector<1x128x128xf32> to vector<128x128xf32>
    %cst_16 = arith.constant dense<0.000000e+00> : vector<32x128xf32>
    %14 = tpu.matmul %10, %13, %cst_16 {dimension_numbers = #tpu.dot_dimension_numbers<[1], [0], [0], [1], [0, 0, 1, 1], [], []>} : vector<32x128xf32>, vector<128x128xf32>, vector<32x128xf32> -> vector<32x128xf32>
    %15 = arith.addf %11, %14 : vector<32x128xf32>
    %c0_17 = arith.constant 0 : index
    %c0_18 = arith.constant 0 : index
    %16 = vector.load %arg6[%c0_17, %c0_18] : memref<32x128xf32, #tpu.memory_space<vmem>>, vector<32x128xf32>
    tpu.vector_store %arg6[%c0_17, %c0_18], %15 {strides = array<i32>} : memref<32x128xf32, #tpu.memory_space<vmem>>, vector<32x128xf32>,
    %cst_19 = arith.constant dense<0.000000e+00> : vector<32x128xf32>
    %17 = tpu.matmul %9, %10, %cst_19 {dimension_numbers = #tpu.dot_dimension_numbers<[1], [0], [0], [1], [0, 0, 1, 1], [], []>} : vector<32x32xf32>, vector<32x128xf32>, vector<32x128xf32> -> vector<32x128xf32>
    %c0_20 = arith.constant 0 : index
    %c0_21 = arith.constant 0 : index
    %18 = vector.load %arg6[%c0_20, %c0_21] : memref<32x128xf32, #tpu.memory_space<vmem>>, vector<32x128xf32>
    %c2 = arith.constant 2 : index
    %c0_22 = arith.constant 0 : index
    %c0_23 = arith.constant 0 : index
    %19 = vector.load %arg3[%c2, %c0_22, %c0_23] : memref<7x128x128xf32, #tpu.memory_space<vmem>>, vector<1x128x128xf32>
    %20 = vector.shape_cast %19 : vector<1x128x128xf32> to vector<128x128xf32>
    %cst_24 = arith.constant dense<0.000000e+00> : vector<32x128xf32>
    %21 = tpu.matmul %17, %20, %cst_24 {dimension_numbers = #tpu.dot_dimension_numbers<[1], [0], [0], [1], [0, 0, 1, 1], [], []>} : vector<32x128xf32>, vector<128x128xf32>, vector<32x128xf32> -> vector<32x128xf32>
    %22 = arith.addf %18, %21 : vector<32x128xf32>
    %c0_25 = arith.constant 0 : index
    %c0_26 = arith.constant 0 : index
    %23 = vector.load %arg6[%c0_25, %c0_26] : memref<32x128xf32, #tpu.memory_space<vmem>>, vector<32x128xf32>
    tpu.vector_store %arg6[%c0_25, %c0_26], %22 {strides = array<i32>} : memref<32x128xf32, #tpu.memory_space<vmem>>, vector<32x128xf32>,
    %c1_27 = arith.constant 1 : index
    %c0_28 = arith.constant 0 : index
    %c0_29 = arith.constant 0 : index
    %24 = vector.load %arg2[%c1_27, %c0_28, %c0_29] : memref<3x32x32xf32, #tpu.memory_space<vmem>>, vector<1x32x32xf32>
    %25 = vector.shape_cast %24 : vector<1x32x32xf32> to vector<32x32xf32>
    %cst_30 = arith.constant dense<0.000000e+00> : vector<32x128xf32>
    %26 = tpu.matmul %25, %0, %cst_30 {dimension_numbers = #tpu.dot_dimension_numbers<[1], [0], [0], [1], [0, 0, 1, 1], [], []>} : vector<32x32xf32>, vector<32x128xf32>, vector<32x128xf32> -> vector<32x128xf32>
    %c0_31 = arith.constant 0 : index
    %c0_32 = arith.constant 0 : index
    %27 = vector.load %arg6[%c0_31, %c0_32] : memref<32x128xf32, #tpu.memory_space<vmem>>, vector<32x128xf32>
    %c3 = arith.constant 3 : index
    %c0_33 = arith.constant 0 : index
    %c0_34 = arith.constant 0 : index
    %28 = vector.load %arg3[%c3, %c0_33, %c0_34] : memref<7x128x128xf32, #tpu.memory_space<vmem>>, vector<1x128x128xf32>
    %29 = vector.shape_cast %28 : vector<1x128x128xf32> to vector<128x128xf32>
    %cst_35 = arith.constant dense<0.000000e+00> : vector<32x128xf32>
    %30 = tpu.matmul %26, %29, %cst_35 {dimension_numbers = #tpu.dot_dimension_numbers<[1], [0], [0], [1], [0, 0, 1, 1], [], []>} : vector<32x128xf32>, vector<128x128xf32>, vector<32x128xf32> -> vector<32x128xf32>
    %31 = arith.addf %27, %30 : vector<32x128xf32>
    %c0_36 = arith.constant 0 : index
    %c0_37 = arith.constant 0 : index
    %32 = vector.load %arg6[%c0_36, %c0_37] : memref<32x128xf32, #tpu.memory_space<vmem>>, vector<32x128xf32>
    tpu.vector_store %arg6[%c0_36, %c0_37], %31 {strides = array<i32>} : memref<32x128xf32, #tpu.memory_space<vmem>>, vector<32x128xf32>,
    %cst_38 = arith.constant dense<0.000000e+00> : vector<32x128xf32>
    %33 = tpu.matmul %25, %26, %cst_38 {dimension_numbers = #tpu.dot_dimension_numbers<[1], [0], [0], [1], [0, 0, 1, 1], [], []>} : vector<32x32xf32>, vector<32x128xf32>, vector<32x128xf32> -> vector<32x128xf32>
    %c0_39 = arith.constant 0 : index
    %c0_40 = arith.constant 0 : index
    %34 = vector.load %arg6[%c0_39, %c0_40] : memref<32x128xf32, #tpu.memory_space<vmem>>, vector<32x128xf32>
    %c4 = arith.constant 4 : index
    %c0_41 = arith.constant 0 : index
    %c0_42 = arith.constant 0 : index
    %35 = vector.load %arg3[%c4, %c0_41, %c0_42] : memref<7x128x128xf32, #tpu.memory_space<vmem>>, vector<1x128x128xf32>
    %36 = vector.shape_cast %35 : vector<1x128x128xf32> to vector<128x128xf32>
    %cst_43 = arith.constant dense<0.000000e+00> : vector<32x128xf32>
    %37 = tpu.matmul %33, %36, %cst_43 {dimension_numbers = #tpu.dot_dimension_numbers<[1], [0], [0], [1], [0, 0, 1, 1], [], []>} : vector<32x128xf32>, vector<128x128xf32>, vector<32x128xf32> -> vector<32x128xf32>
    %38 = arith.addf %34, %37 : vector<32x128xf32>
    %c0_44 = arith.constant 0 : index
    %c0_45 = arith.constant 0 : index
    %39 = vector.load %arg6[%c0_44, %c0_45] : memref<32x128xf32, #tpu.memory_space<vmem>>, vector<32x128xf32>
    tpu.vector_store %arg6[%c0_44, %c0_45], %38 {strides = array<i32>} : memref<32x128xf32, #tpu.memory_space<vmem>>, vector<32x128xf32>,
    %c2_46 = arith.constant 2 : index
    %c0_47 = arith.constant 0 : index
    %c0_48 = arith.constant 0 : index
    %40 = vector.load %arg2[%c2_46, %c0_47, %c0_48] : memref<3x32x32xf32, #tpu.memory_space<vmem>>, vector<1x32x32xf32>
    %41 = vector.shape_cast %40 : vector<1x32x32xf32> to vector<32x32xf32>
    %cst_49 = arith.constant dense<0.000000e+00> : vector<32x128xf32>
    %42 = tpu.matmul %41, %0, %cst_49 {dimension_numbers = #tpu.dot_dimension_numbers<[1], [0], [0], [1], [0, 0, 1, 1], [], []>} : vector<32x32xf32>, vector<32x128xf32>, vector<32x128xf32> -> vector<32x128xf32>
    %c0_50 = arith.constant 0 : index
    %c0_51 = arith.constant 0 : index
    %43 = vector.load %arg6[%c0_50, %c0_51] : memref<32x128xf32, #tpu.memory_space<vmem>>, vector<32x128xf32>
    %c5 = arith.constant 5 : index
    %c0_52 = arith.constant 0 : index
    %c0_53 = arith.constant 0 : index
    %44 = vector.load %arg3[%c5, %c0_52, %c0_53] : memref<7x128x128xf32, #tpu.memory_space<vmem>>, vector<1x128x128xf32>
    %45 = vector.shape_cast %44 : vector<1x128x128xf32> to vector<128x128xf32>
    %cst_54 = arith.constant dense<0.000000e+00> : vector<32x128xf32>
    %46 = tpu.matmul %42, %45, %cst_54 {dimension_numbers = #tpu.dot_dimension_numbers<[1], [0], [0], [1], [0, 0, 1, 1], [], []>} : vector<32x128xf32>, vector<128x128xf32>, vector<32x128xf32> -> vector<32x128xf32>
    %47 = arith.addf %43, %46 : vector<32x128xf32>
    %c0_55 = arith.constant 0 : index
    %c0_56 = arith.constant 0 : index
    %48 = vector.load %arg6[%c0_55, %c0_56] : memref<32x128xf32, #tpu.memory_space<vmem>>, vector<32x128xf32>
    tpu.vector_store %arg6[%c0_55, %c0_56], %47 {strides = array<i32>} : memref<32x128xf32, #tpu.memory_space<vmem>>, vector<32x128xf32>,
    %cst_57 = arith.constant dense<0.000000e+00> : vector<32x128xf32>
    %49 = tpu.matmul %41, %42, %cst_57 {dimension_numbers = #tpu.dot_dimension_numbers<[1], [0], [0], [1], [0, 0, 1, 1], [], []>} : vector<32x32xf32>, vector<32x128xf32>, vector<32x128xf32> -> vector<32x128xf32>
    %c0_58 = arith.constant 0 : index
    %c0_59 = arith.constant 0 : index
    %50 = vector.load %arg6[%c0_58, %c0_59] : memref<32x128xf32, #tpu.memory_space<vmem>>, vector<32x128xf32>
    %c6 = arith.constant 6 : index
    %c0_60 = arith.constant 0 : index
    %c0_61 = arith.constant 0 : index
    %51 = vector.load %arg3[%c6, %c0_60, %c0_61] : memref<7x128x128xf32, #tpu.memory_space<vmem>>, vector<1x128x128xf32>
    %52 = vector.shape_cast %51 : vector<1x128x128xf32> to vector<128x128xf32>
    %cst_62 = arith.constant dense<0.000000e+00> : vector<32x128xf32>
    %53 = tpu.matmul %49, %52, %cst_62 {dimension_numbers = #tpu.dot_dimension_numbers<[1], [0], [0], [1], [0, 0, 1, 1], [], []>} : vector<32x128xf32>, vector<128x128xf32>, vector<32x128xf32> -> vector<32x128xf32>
    %54 = arith.addf %50, %53 : vector<32x128xf32>
    %c0_63 = arith.constant 0 : index
    %c0_64 = arith.constant 0 : index
    %55 = vector.load %arg6[%c0_63, %c0_64] : memref<32x128xf32, #tpu.memory_space<vmem>>, vector<32x128xf32>
    tpu.vector_store %arg6[%c0_63, %c0_64], %54 {strides = array<i32>} : memref<32x128xf32, #tpu.memory_space<vmem>>, vector<32x128xf32>,
    %c0_65 = arith.constant 0 : index
    %c0_66 = arith.constant 0 : index
    %56 = vector.load %arg6[%c0_65, %c0_66] : memref<32x128xf32, #tpu.memory_space<vmem>>, vector<32x128xf32>
    %c0_67 = arith.constant 0 : index
    %c0_68 = arith.constant 0 : index
    %57 = vector.load %arg5[%c0_67, %c0_68] : memref<32x128xf32, #tpu.memory_space<vmem>>, vector<32x128xf32>
    tpu.vector_store %arg5[%c0_67, %c0_68], %56 {strides = array<i32>} : memref<32x128xf32, #tpu.memory_space<vmem>>, vector<32x128xf32>,
    return
  }
  func.func @transform_0(%arg0: i32) -> (i32, i32) {
    %c0_i32 = arith.constant 0 : i32
    %c0_i32_0 = arith.constant 0 : i32
    return %arg0, %c0_i32 : i32, i32
  }
  func.func @transform_1(%arg0: i32) -> (i32, i32, i32) {
    %c0_i32 = arith.constant 0 : i32
    %c0_i32_0 = arith.constant 0 : i32
    %c0_i32_1 = arith.constant 0 : i32
    %c0_i32_2 = arith.constant 0 : i32
    return %c0_i32, %c0_i32_0, %c0_i32_1 : i32, i32, i32
  }
  func.func @transform_2(%arg0: i32) -> (i32, i32, i32) {
    %c0_i32 = arith.constant 0 : i32
    %c0_i32_0 = arith.constant 0 : i32
    %c0_i32_1 = arith.constant 0 : i32
    %c0_i32_2 = arith.constant 0 : i32
    return %c0_i32, %c0_i32_0, %c0_i32_1 : i32, i32, i32
  }
  func.func @transform_3(%arg0: i32) -> (i32, i32) {
    %c0_i32 = arith.constant 0 : i32
    %c0_i32_0 = arith.constant 0 : i32
    %c0_i32_1 = arith.constant 0 : i32
    return %c0_i32, %c0_i32_0 : i32, i32
  }
  func.func @transform_4(%arg0: i32) -> (i32, i32) {
    %c0_i32 = arith.constant 0 : i32
    %c0_i32_0 = arith.constant 0 : i32
    return %arg0, %c0_i32 : i32, i32
  }
}

</mosaic_0001>

<llo_original>
// kernel: tpu_custom_call.1
$region0: #{tpu_custom_call.1}
  #allocation0 [shape = 'u32[]', space=smem, size = 0x4, offset = 0x4, fixed_abs, tag = 'smem constant byte address 0x4 - core index']
  #allocation1 [shape = 'u32[144,128]{1,0:T(1,128)}', space=vmem, size = 0x12000, scoped, tag = 'internal scratch']
  #allocation2 [shape = 'f32[32,128]{1,0:T(8,128)}', space=vmem, size = 0x4000, scoped, tag = 'scratch operand']
  %s0 = inlined_call_operand.hbm [shape: f32[32,128], index: 0, kind: input, shape index: {}]
  %s1 = inlined_call_operand.hbm [shape: f32[3,32,32], index: 1, kind: input, shape index: {}]
  %s2 = inlined_call_operand.hbm [shape: f32[7,128,128], index: 2, kind: input, shape index: {}]
  %s3 = inlined_call_operand.vmem [shape: f32[1,128], index: 3, kind: input, shape index: {}]
  %s4 = inlined_call_operand.hbm [shape: f32[32,128], index: 4, kind: output, shape index: {}]
  %s5 = sld [smem:[#allocation0]]
  $region38: #{tpu_custom_call.1} parent=0
    _
  %s7 = ssub.s32 1, %s5
  %s8 = scalar_select 0, %s7, %s5
  $region1: #{tpu_custom_call.1} parent=0
    #allocation3 [shape = 'u8[16384]{0}', space=vmem, size = 0x4000, scoped, tag = 'input window, operand 0, single buffered']
    #allocation4 [shape = 's32[1]{0}', space=sflag, size = 0x4, scoped, tag = 'scoped memory for tpu_custom_call.1']
    #allocation5 [shape = 's32[1]{0}', space=sflag, size = 0x4, scoped, tag = 'scoped memory for tpu_custom_call.1']
    #allocation6 [shape = 'u8[49152]{0}', space=vmem, size = 0xc000, scoped, tag = 'input window, operand 1, single buffered']
    #allocation7 [shape = 's32[1]{0}', space=sflag, size = 0x4, scoped, tag = 'scoped memory for tpu_custom_call.1']
    #allocation8 [shape = 'u8[458752]{0}', space=vmem, size = 0x70000, scoped, tag = 'input window, operand 2, single buffered']
    #allocation9 [shape = 'u8[16384]{0}', space=vmem, size = 0x4000, scoped, tag = 'output window, operand 0, single buffered']
    %9 = vsyncpa [#allocation4], 0
    %10 = vsyncpa [#allocation7], 0
    %11 = vsyncpa [#allocation5], 0
    // Predicated region
    $region2: #{tpu_custom_call.1} parent=1 // pred_check
      _
    $region3: #{tpu_custom_call.1} parent=1 // pred_check_branch
      %13 = sbr.rel (0) target = $region5
    $region4: #{tpu_custom_call.1} parent=1 // pred_region
      %s15 = ssub.s32 512, 512
      %16 = vsyncadd [#allocation4], %s15
      %s17 = sshll.u32 [#allocation3], 4
      %s18 = int_to_ptr.vmem [resolvable:$true] %s17
      %23 = dma.hbm_to_vmem [thread:$0]  %s0, 512, %s18, [#allocation4], 128, 128, 8
    $region5: #{tpu_custom_call.1} parent=1 // pred_fallthru
      _
    // Predicated region
    $region6: #{tpu_custom_call.1} parent=1 // pred_check
      _
    $region7: #{tpu_custom_call.1} parent=1 // pred_check_branch
      %25 = sbr.rel (0) target = $region9
    $region8: #{tpu_custom_call.1} parent=1 // pred_region
      %s27 = ssub.s32 1536, 1536
      %28 = vsyncadd [#allocation7], %s27
      %s29 = sshll.u32 [#allocation6], 4
      %s30 = int_to_ptr.vmem [resolvable:$true] %s29
      %35 = dma.hbm_to_vmem [thread:$0]  %s1, 1536, %s30, [#allocation7], 128, 128, 8
    $region9: #{tpu_custom_call.1} parent=1 // pred_fallthru
      _
    // Predicated region
    $region10: #{tpu_custom_call.1} parent=1 // pred_check
      _
    $region11: #{tpu_custom_call.1} parent=1 // pred_check_branch
      %37 = sbr.rel (0) target = $region13
    $region12: #{tpu_custom_call.1} parent=1 // pred_region
      %s39 = ssub.s32 14336, 14336
      %40 = vsyncadd [#allocation7], %s39
      %s41 = sshll.u32 [#allocation8], 4
      %s42 = int_to_ptr.vmem [resolvable:$true] %s41
      %47 = dma.hbm_to_vmem [thread:$0]  %s2, 14336, %s42, [#allocation7], 128, 128, 8
    $region13: #{tpu_custom_call.1} parent=1 // pred_fallthru
      _
    // Predicated region
    $region14: #{tpu_custom_call.1} parent=1 // pred_check
      _
    $region15: #{tpu_custom_call.1} parent=1 // pred_check_branch
      %49 = sbr.rel (0) target = $region17
    $region16: #{tpu_custom_call.1} parent=1 // pred_region
      _
    $region17: #{tpu_custom_call.1} parent=1 // pred_fallthru
      _
    // Predicated region
    $region18: #{tpu_custom_call.1} parent=1 // pred_check
      _
    $region19: #{tpu_custom_call.1} parent=1 // pred_check_branch
      %51 = sbr.rel (0) target = $region21
    $region20: #{tpu_custom_call.1} parent=1 // pred_region
      %52 = dma.done [#allocation4], 512
    $region21: #{tpu_custom_call.1} parent=1 // pred_fallthru
      _
    // Predicated region
    $region22: #{tpu_custom_call.1} parent=1 // pred_check
      _
    $region23: #{tpu_custom_call.1} parent=1 // pred_check_branch
      %54 = sbr.rel (0) target = $region25
    $region24: #{tpu_custom_call.1} parent=1 // pred_region
      %55 = dma.done [#allocation7], 1536
    $region25: #{tpu_custom_call.1} parent=1 // pred_fallthru
      _
    // Predicated region
    $region26: #{tpu_custom_call.1} parent=1 // pred_check
      _
    $region27: #{tpu_custom_call.1} parent=1 // pred_check_branch
      %57 = sbr.rel (0) target = $region29
    $region28: #{tpu_custom_call.1} parent=1 // pred_region
      %58 = dma.done [#allocation7], 14336
    $region29: #{tpu_custom_call.1} parent=1 // pred_fallthru
      _
    %v59 = vld [vmem:[#allocation3] sm:$0xff]
    %v60 = vld [vmem:[#allocation3 + $0x8] sm:$0xff]
    %v61 = vld [vmem:[#allocation3 + $0x10] sm:$0xff]
    %v62 = vld [vmem:[#allocation3 + $0x18] sm:$0xff]
    %v63 = vld [vmem:[#allocation8] sm:$0xff]
    %v64 = vld [vmem:[#allocation8 + $0x8] sm:$0xff]
    %v65 = vld [vmem:[#allocation8 + $0x10] sm:$0xff]
    %v66 = vld [vmem:[#allocation8 + $0x18] sm:$0xff]
    %v67 = vld [vmem:[#allocation8 + $0x20] sm:$0xff]
    %v68 = vld [vmem:[#allocation8 + $0x28] sm:$0xff]
    %v69 = vld [vmem:[#allocation8 + $0x30] sm:$0xff]
    %v70 = vld [vmem:[#allocation8 + $0x38] sm:$0xff]
    %v71 = vld [vmem:[#allocation8 + $0x40] sm:$0xff]
    %v72 = vld [vmem:[#allocation8 + $0x48] sm:$0xff]
    %v73 = vld [vmem:[#allocation8 + $0x50] sm:$0xff]
    %v74 = vld [vmem:[#allocation8 + $0x58] sm:$0xff]
    %v75 = vld [vmem:[#allocation8 + $0x60] sm:$0xff]
    %v76 = vld [vmem:[#allocation8 + $0x68] sm:$0xff]
    %v77 = vld [vmem:[#allocation8 + $0x70] sm:$0xff]
    %v78 = vld [vmem:[#allocation8 + $0x78] sm:$0xff]
    %v79 = vld [vmem:[%s3] sm:$0x1]
    %v81 = vlaneseq
    %v82 = vshrl.u32 %v81, 7
    %v83 = vsub.s32 0, %v82
    %v84 = vrot.slane %v79, %v83
    %86 = vmatprep.subr.mxu0 0.0
    %87 = vmatpush1.msra.mxu0 %v63
    %88 = vmatprep.subr.mxu0 0.0
    %89 = vmatpush1.msra.mxu0 %v64
    %90 = vmatprep.subr.mxu0 0.0
    %91 = vmatpush1.msra.mxu0 %v65
    %92 = vmatprep.subr.mxu0 0.0
    %93 = vmatpush1.msra.mxu0 %v66
    %94 = vmatprep.subr.mxu0 0.0
    %95 = vmatpush1.msra.mxu0 %v67
    %96 = vmatprep.subr.mxu0 0.0
    %97 = vmatpush1.msra.mxu0 %v68
    %98 = vmatprep.subr.mxu0 0.0
    %99 = vmatpush1.msra.mxu0 %v69
    %100 = vmatprep.subr.mxu0 0.0
    %101 = vmatpush1.msra.mxu0 %v70
    %102 = vmatprep.subr.mxu0 0.0
    %103 = vmatpush1.msra.mxu0 %v71
    %104 = vmatprep.subr.mxu0 0.0
    %105 = vmatpush1.msra.mxu0 %v72
    %106 = vmatprep.subr.mxu0 0.0
    %107 = vmatpush1.msra.mxu0 %v73
    %108 = vmatprep.subr.mxu0 0.0
    %109 = vmatpush1.msra.mxu0 %v74
    %110 = vmatprep.subr.mxu0 0.0
    %111 = vmatpush1.msra.mxu0 %v75
    %112 = vmatprep.subr.mxu0 0.0
    %113 = vmatpush1.msra.mxu0 %v76
    %114 = vmatprep.subr.mxu0 0.0
    %115 = vmatpush1.msra.mxu0 %v77
    %116 = vmatprep.subr.mxu0 0.0
    %117 = vmatpush1.msra.mxu0 %v78
    %118 = vmatprep.subr.mxu0 0.0
    %119 = vmatpush1.msra.mxu0 0.0
    %120 = vmatprep.subr.mxu0 0.0
    %121 = vmatpush1.msra.mxu0 0.0
    %122 = vmatprep.subr.mxu0 0.0
    %123 = vmatpush1.msra.mxu0 0.0
    %124 = vmatprep.subr.mxu0 0.0
    %125 = vmatpush1.msra.mxu0 0.0
    %126 = vmatprep.subr.mxu0 0.0
    %127 = vmatpush1.msra.mxu0 0.0
    %128 = vmatprep.subr.mxu0 0.0
    %129 = vmatpush1.msra.mxu0 0.0
    %130 = vmatprep.subr.mxu0 0.0
    %131 = vmatpush1.msra.mxu0 0.0
    %132 = vmatprep.subr.mxu0 0.0
    %133 = vmatpush1.msra.mxu0 0.0
    %134 = vmatprep.subr.mxu0 0.0
    %135 = vmatpush1.msra.mxu0 0.0
    %136 = vmatprep.subr.mxu0 0.0
    %137 = vmatpush1.msra.mxu0 0.0
    %138 = vmatprep.subr.mxu0 0.0
    %139 = vmatpush1.msra.mxu0 0.0
    %140 = vmatprep.subr.mxu0 0.0
    %141 = vmatpush1.msra.mxu0 0.0
    %142 = vmatprep.subr.mxu0 0.0
    %143 = vmatpush1.msra.mxu0 0.0
    %144 = vmatprep.subr.mxu0 0.0
    %145 = vmatpush1.msra.mxu0 0.0
    %146 = vmatprep.subr.mxu0 0.0
    %147 = vmatpush1.msra.mxu0 0.0
    %148 = vmatprep.subr.mxu0 0.0
    %149 = vmatpush1.msra.mxu0 0.0
    %150 = vmatprep.mubr.f32.mxu0 0.0
    %151 = vmatmul.mubr.f32.gmra.mrb[0].mxu0 %v59
    %v152 = vpop.f32.mrb[0].mxu0
    %v153 = vadd.f32 %v84, %v152
    %v154 = vpop.f32.mrb[0].mxu0
    %155 = vmatprep.mubr.f32.mxu0 0.0
    %156 = vmatmul.mubr.f32.gmra.mrb[0].mxu0 %v60
    %v157 = vpop.f32.mrb[0].mxu0
    %v158 = vadd.f32 %v84, %v157
    %v159 = vpop.f32.mrb[0].mxu0
    %160 = vmatprep.mubr.f32.mxu0 0.0
    %161 = vmatmul.mubr.f32.gmra.mrb[0].mxu0 %v61
    %v162 = vpop.f32.mrb[0].mxu0
    %v163 = vadd.f32 %v84, %v162
    %v164 = vpop.f32.mrb[0].mxu0
    %165 = vmatprep.mubr.f32.mxu0 0.0
    %166 = vmatmul.mubr.f32.gmra.mrb[0].mxu0 %v62
    %v167 = vpop.f32.mrb[0].mxu0
    %v168 = vadd.f32 %v84, %v167
    %v169 = vpop.f32.mrb[0].mxu0
    %170 = vdwg.mxu0
    %171 = vst [vmem:[#allocation2] sm:$0xff] %v153
    %172 = vst [vmem:[#allocation2 + $0x8] sm:$0xff] %v158
    %173 = vst [vmem:[#allocation2 + $0x10] sm:$0xff] %v163
    %174 = vst [vmem:[#allocation2 + $0x18] sm:$0xff] %v168
    %v175 = vld [vmem:[#allocation6] sm:$0xff]
    %v176 = vld [vmem:[#allocation6 + $0x8] sm:$0xff]
    %v177 = vld [vmem:[#allocation6 + $0x10] sm:$0xff]
    %v178 = vld [vmem:[#allocation6 + $0x18] sm:$0xff]
    %vm179 = vcmask 261120
    %v181 = vsel %vm179, %v175, 0
    %v184 = vsel %vm179, %v176, 0
    %v187 = vsel %vm179, %v177, 0
    %v190 = vsel %vm179, %v178, 0
    %192 = vmatprep.subr.mxu0 0.0
    %193 = vmatpush1.msra.mxu0 %v59
    %194 = vmatprep.subr.mxu0 0.0
    %195 = vmatpush1.msra.mxu0 %v60
    %196 = vmatprep.subr.mxu0 0.0
    %197 = vmatpush1.msra.mxu0 %v61
    %198 = vmatprep.subr.mxu0 0.0
    %199 = vmatpush1.msra.mxu0 %v62
    %200 = vmatprep.subr.mxu0 0.0
    %201 = vmatpush1.msra.mxu0 0.0
    %202 = vmatprep.subr.mxu0 0.0
    %203 = vmatpush1.msra.mxu0 0.0
    %204 = vmatprep.subr.mxu0 0.0
    %205 = vmatpush1.msra.mxu0 0.0
    %206 = vmatprep.subr.mxu0 0.0
    %207 = vmatpush1.msra.mxu0 0.0
    %208 = vmatprep.subr.mxu0 0.0
    %209 = vmatpush1.msra.mxu0 0.0
    %210 = vmatprep.subr.mxu0 0.0
    %211 = vmatpush1.msra.mxu0 0.0
    %212 = vmatprep.subr.mxu0 0.0
    %213 = vmatpush1.msra.mxu0 0.0
    %214 = vmatprep.subr.mxu0 0.0
    %215 = vmatpush1.msra.mxu0 0.0
    %216 = vmatprep.subr.mxu0 0.0
    %217 = vmatpush1.msra.mxu0 0.0
    %218 = vmatprep.subr.mxu0 0.0
    %219 = vmatpush1.msra.mxu0 0.0
    %220 = vmatprep.subr.mxu0 0.0
    %221 = vmatpush1.msra.mxu0 0.0
    %222 = vmatprep.subr.mxu0 0.0
    %223 = vmatpush1.msra.mxu0 0.0
    %224 = vmatprep.subr.mxu0 0.0
    %225 = vmatpush1.msra.mxu0 0.0
    %226 = vmatprep.subr.mxu0 0.0
    %227 = vmatpush1.msra.mxu0 0.0
    %228 = vmatprep.subr.mxu0 0.0
    %229 = vmatpush1.msra.mxu0 0.0
    %230 = vmatprep.subr.mxu0 0.0
    %231 = vmatpush1.msra.mxu0 0.0
    %232 = vmatprep.subr.mxu0 0.0
    %233 = vmatpush1.msra.mxu0 0.0
    %234 = vmatprep.subr.mxu0 0.0
    %235 = vmatpush1.msra.mxu0 0.0
    %236 = vmatprep.subr.mxu0 0.0
    %237 = vmatpush1.msra.mxu0 0.0
    %238 = vmatprep.subr.mxu0 0.0
    %239 = vmatpush1.msra.mxu0 0.0
    %240 = vmatprep.subr.mxu0 0.0
    %241 = vmatpush1.msra.mxu0 0.0
    %242 = vmatprep.subr.mxu0 0.0
    %243 = vmatpush1.msra.mxu0 0.0
    %244 = vmatprep.subr.mxu0 0.0
    %245 = vmatpush1.msra.mxu0 0.0
    %246 = vmatprep.subr.mxu0 0.0
    %247 = vmatpush1.msra.mxu0 0.0
    %248 = vmatprep.subr.mxu0 0.0
    %249 = vmatpush1.msra.mxu0 0.0
    %250 = vmatprep.subr.mxu0 0.0
    %251 = vmatpush1.msra.mxu0 0.0
    %252 = vmatprep.subr.mxu0 0.0
    %253 = vmatpush1.msra.mxu0 0.0
    %254 = vmatprep.subr.mxu0 0.0
    %255 = vmatpush1.msra.mxu0 0.0
    %256 = vmatprep.mubr.f32.mxu0 0.0
    %257 = vmatmul.mubr.f32.gmra.mrb[0].mxu0 %v181
    %v258 = vpop.f32.mrb[0].mxu0
    %v259 = vadd.f32 0.0, %v258
    %v260 = vpop.f32.mrb[0].mxu0
    %261 = vmatprep.mubr.f32.mxu0 0.0
    %262 = vmatmul.mubr.f32.gmra.mrb[0].mxu0 %v184
    %v263 = vpop.f32.mrb[0].mxu0
    %v264 = vadd.f32 0.0, %v263
    %v265 = vpop.f32.mrb[0].mxu0
    %266 = vmatprep.mubr.f32.mxu0 0.0
    %267 = vmatmul.mubr.f32.gmra.mrb[0].mxu0 %v187
    %v268 = vpop.f32.mrb[0].mxu0
    %v269 = vadd.f32 0.0, %v268
    %v270 = vpop.f32.mrb[0].mxu0
    %271 = vmatprep.mubr.f32.mxu0 0.0
    %272 = vmatmul.mubr.f32.gmra.mrb[0].mxu0 %v190
    %v273 = vpop.f32.mrb[0].mxu0
    %v274 = vadd.f32 0.0, %v273
    %v275 = vpop.f32.mrb[0].mxu0
    %276 = vdwg.mxu0
    %v277 = vld [vmem:[#allocation2] sm:$0xff]
    %v278 = vld [vmem:[#allocation2 + $0x8] sm:$0xff]
    %v279 = vld [vmem:[#allocation2 + $0x10] sm:$0xff]
    %v280 = vld [vmem:[#allocation2 + $0x18] sm:$0xff]
    %s281 = scalar_lea.vmem [#allocation8], 128
    %v282 = vld [vmem:[%s281] sm:$0xff]
    %v283 = vld [vmem:[%s281 + $0x8] sm:$0xff]
    %v284 = vld [vmem:[%s281 + $0x10] sm:$0xff]
    %v285 = vld [vmem:[%s281 + $0x18] sm:$0xff]
    %v286 = vld [vmem:[%s281 + $0x20] sm:$0xff]
    %v287 = vld [vmem:[%s281 + $0x28] sm:$0xff]
    %v288 = vld [vmem:[%s281 + $0x30] sm:$0xff]
    %v289 = vld [vmem:[%s281 + $0x38] sm:$0xff]
    %v290 = vld [vmem:[%s281 + $0x40] sm:$0xff]
    %v291 = vld [vmem:[%s281 + $0x48] sm:$0xff]
    %v292 = vld [vmem:[%s281 + $0x50] sm:$0xff]
    %v293 = vld [vmem:[%s281 + $0x58] sm:$0xff]
    %v294 = vld [vmem:[%s281 + $0x60] sm:$0xff]
    %v295 = vld [vmem:[%s281 + $0x68] sm:$0xff]
    %v296 = vld [vmem:[%s281 + $0x70] sm:$0xff]
    %v297 = vld [vmem:[%s281 + $0x78] sm:$0xff]
    %298 = vmatprep.subr.mxu0 0.0
    %299 = vmatpush1.msra.mxu0 %v282
    %300 = vmatprep.subr.mxu0 0.0
    %301 = vmatpush1.msra.mxu0 %v283
    %302 = vmatprep.subr.mxu0 0.0
    %303 = vmatpush1.msra.mxu0 %v284
    %304 = vmatprep.subr.mxu0 0.0
    %305 = vmatpush1.msra.mxu0 %v285
    %306 = vmatprep.subr.mxu0 0.0
    %307 = vmatpush1.msra.mxu0 %v286
    %308 = vmatprep.subr.mxu0 0.0
    %309 = vmatpush1.msra.mxu0 %v287
    %310 = vmatprep.subr.mxu0 0.0
    %311 = vmatpush1.msra.mxu0 %v288
    %312 = vmatprep.subr.mxu0 0.0
    %313 = vmatpush1.msra.mxu0 %v289
    %314 = vmatprep.subr.mxu0 0.0
    %315 = vmatpush1.msra.mxu0 %v290
    %316 = vmatprep.subr.mxu0 0.0
    %317 = vmatpush1.msra.mxu0 %v291
    %318 = vmatprep.subr.mxu0 0.0
    %319 = vmatpush1.msra.mxu0 %v292
    %320 = vmatprep.subr.mxu0 0.0
    %321 = vmatpush1.msra.mxu0 %v293
    %322 = vmatprep.subr.mxu0 0.0
    %323 = vmatpush1.msra.mxu0 %v294
    %324 = vmatprep.subr.mxu0 0.0
    %325 = vmatpush1.msra.mxu0 %v295
    %326 = vmatprep.subr.mxu0 0.0
    %327 = vmatpush1.msra.mxu0 %v296
    %328 = vmatprep.subr.mxu0 0.0
    %329 = vmatpush1.msra.mxu0 %v297
    %330 = vmatprep.subr.mxu0 0.0
    %331 = vmatpush1.msra.mxu0 0.0
    %332 = vmatprep.subr.mxu0 0.0
    %333 = vmatpush1.msra.mxu0 0.0
    %334 = vmatprep.subr.mxu0 0.0
    %335 = vmatpush1.msra.mxu0 0.0
    %336 = vmatprep.subr.mxu0 0.0
    %337 = vmatpush1.msra.mxu0 0.0
    %338 = vmatprep.subr.mxu0 0.0
    %339 = vmatpush1.msra.mxu0 0.0
    %340 = vmatprep.subr.mxu0 0.0
    %341 = vmatpush1.msra.mxu0 0.0
    %342 = vmatprep.subr.mxu0 0.0
    %343 = vmatpush1.msra.mxu0 0.0
    %344 = vmatprep.subr.mxu0 0.0
    %345 = vmatpush1.msra.mxu0 0.0
    %346 = vmatprep.subr.mxu0 0.0
    %347 = vmatpush1.msra.mxu0 0.0
    %348 = vmatprep.subr.mxu0 0.0
    %349 = vmatpush1.msra.mxu0 0.0
    %350 = vmatprep.subr.mxu0 0.0
    %351 = vmatpush1.msra.mxu0 0.0
    %352 = vmatprep.subr.mxu0 0.0
    %353 = vmatpush1.msra.mxu0 0.0
    %354 = vmatprep.subr.mxu0 0.0
    %355 = vmatpush1.msra.mxu0 0.0
    %356 = vmatprep.subr.mxu0 0.0
    %357 = vmatpush1.msra.mxu0 0.0
    %358 = vmatprep.subr.mxu0 0.0
    %359 = vmatpush1.msra.mxu0 0.0
    %360 = vmatprep.subr.mxu0 0.0
    %361 = vmatpush1.msra.mxu0 0.0
    %362 = vmatprep.mubr.f32.mxu0 0.0
    %363 = vmatmul.mubr.f32.gmra.mrb[0].mxu0 %v259
    %v364 = vpop.f32.mrb[0].mxu0
    %v365 = vadd.f32 0.0, %v364
    %v366 = vpop.f32.mrb[0].mxu0
    %367 = vmatprep.mubr.f32.mxu0 0.0
    %368 = vmatmul.mubr.f32.gmra.mrb[0].mxu0 %v264
    %v369 = vpop.f32.mrb[0].mxu0
    %v370 = vadd.f32 0.0, %v369
    %v371 = vpop.f32.mrb[0].mxu0
    %372 = vmatprep.mubr.f32.mxu0 0.0
    %373 = vmatmul.mubr.f32.gmra.mrb[0].mxu0 %v269
    %v374 = vpop.f32.mrb[0].mxu0
    %v375 = vadd.f32 0.0, %v374
    %v376 = vpop.f32.mrb[0].mxu0
    %377 = vmatprep.mubr.f32.mxu0 0.0
    %378 = vmatmul.mubr.f32.gmra.mrb[0].mxu0 %v274
    %v379 = vpop.f32.mrb[0].mxu0
    %v380 = vadd.f32 0.0, %v379
    %v381 = vpop.f32.mrb[0].mxu0
    %382 = vdwg.mxu0
    %v383 = vadd.f32 %v277, %v365
    %v384 = vadd.f32 %v278, %v370
    %v385 = vadd.f32 %v279, %v375
    %v386 = vadd.f32 %v280, %v380
    %387 = vst [vmem:[#allocation2] sm:$0xff] %v383
    %388 = vst [vmem:[#allocation2 + $0x8] sm:$0xff] %v384
    %389 = vst [vmem:[#allocation2 + $0x10] sm:$0xff] %v385
    %390 = vst [vmem:[#allocation2 + $0x18] sm:$0xff] %v386
    %391 = vmatprep.subr.mxu0 0.0
    %392 = vmatpush1.msra.mxu0 %v259
    %393 = vmatprep.subr.mxu0 0.0
    %394 = vmatpush1.msra.mxu0 %v264
    %395 = vmatprep.subr.mxu0 0.0
    %396 = vmatpush1.msra.mxu0 %v269
    %397 = vmatprep.subr.mxu0 0.0
    %398 = vmatpush1.msra.mxu0 %v274
    %399 = vmatprep.subr.mxu0 0.0
    %400 = vmatpush1.msra.mxu0 0.0
    %401 = vmatprep.subr.mxu0 0.0
    %402 = vmatpush1.msra.mxu0 0.0
    %403 = vmatprep.subr.mxu0 0.0
    %404 = vmatpush1.msra.mxu0 0.0
    %405 = vmatprep.subr.mxu0 0.0
    %406 = vmatpush1.msra.mxu0 0.0
    %407 = vmatprep.subr.mxu0 0.0
    %408 = vmatpush1.msra.mxu0 0.0
    %409 = vmatprep.subr.mxu0 0.0
    %410 = vmatpush1.msra.mxu0 0.0
    %411 = vmatprep.subr.mxu0 0.0
    %412 = vmatpush1.msra.mxu0 0.0
    %413 = vmatprep.subr.mxu0 0.0
    %414 = vmatpush1.msra.mxu0 0.0
    %415 = vmatprep.subr.mxu0 0.0
    %416 = vmatpush1.msra.mxu0 0.0
    %417 = vmatprep.subr.mxu0 0.0
    %418 = vmatpush1.msra.mxu0 0.0
    %419 = vmatprep.subr.mxu0 0.0
    %420 = vmatpush1.msra.mxu0 0.0
    %421 = vmatprep.subr.mxu0 0.0
    %422 = vmatpush1.msra.mxu0 0.0
    %423 = vmatprep.subr.mxu0 0.0
    %424 = vmatpush1.msra.mxu0 0.0
    %425 = vmatprep.subr.mxu0 0.0
    %426 = vmatpush1.msra.mxu0 0.0
    %427 = vmatprep.subr.mxu0 0.0
    %428 = vmatpush1.msra.mxu0 0.0
    %429 = vmatprep.subr.mxu0 0.0
    %430 = vmatpush1.msra.mxu0 0.0
    %431 = vmatprep.subr.mxu0 0.0
    %432 = vmatpush1.msra.mxu0 0.0
    %433 = vmatprep.subr.mxu0 0.0
    %434 = vmatpush1.msra.mxu0 0.0
    %435 = vmatprep.subr.mxu0 0.0
    %436 = vmatpush1.msra.mxu0 0.0
    %437 = vmatprep.subr.mxu0 0.0
    %438 = vmatpush1.msra.mxu0 0.0
    %439 = vmatprep.subr.mxu0 0.0
    %440 = vmatpush1.msra.mxu0 0.0
    %441 = vmatprep.subr.mxu0 0.0
    %442 = vmatpush1.msra.mxu0 0.0
    %443 = vmatprep.subr.mxu0 0.0
    %444 = vmatpush1.msra.mxu0 0.0
    %445 = vmatprep.subr.mxu0 0.0
    %446 = vmatpush1.msra.mxu0 0.0
    %447 = vmatprep.subr.mxu0 0.0
    %448 = vmatpush1.msra.mxu0 0.0
    %449 = vmatprep.subr.mxu0 0.0
    %450 = vmatpush1.msra.mxu0 0.0
    %451 = vmatprep.subr.mxu0 0.0
    %452 = vmatpush1.msra.mxu0 0.0
    %453 = vmatprep.subr.mxu0 0.0
    %454 = vmatpush1.msra.mxu0 0.0
    %455 = vmatprep.mubr.f32.mxu0 0.0
    %456 = vmatmul.mubr.f32.gmra.mrb[0].mxu0 %v181
    %v457 = vpop.f32.mrb[0].mxu0
    %v458 = vadd.f32 0.0, %v457
    %v459 = vpop.f32.mrb[0].mxu0
    %460 = vmatprep.mubr.f32.mxu0 0.0
    %461 = vmatmul.mubr.f32.gmra.mrb[0].mxu0 %v184
    %v462 = vpop.f32.mrb[0].mxu0
    %v463 = vadd.f32 0.0, %v462
    %v464 = vpop.f32.mrb[0].mxu0
    %465 = vmatprep.mubr.f32.mxu0 0.0
    %466 = vmatmul.mubr.f32.gmra.mrb[0].mxu0 %v187
    %v467 = vpop.f32.mrb[0].mxu0
    %v468 = vadd.f32 0.0, %v467
    %v469 = vpop.f32.mrb[0].mxu0
    %470 = vmatprep.mubr.f32.mxu0 0.0
    %471 = vmatmul.mubr.f32.gmra.mrb[0].mxu0 %v190
    %v472 = vpop.f32.mrb[0].mxu0
    %v473 = vadd.f32 0.0, %v472
    %v474 = vpop.f32.mrb[0].mxu0
    %475 = vdwg.mxu0
    %v476 = vld [vmem:[#allocation2] sm:$0xff]
    %v477 = vld [vmem:[#allocation2 + $0x8] sm:$0xff]
    %v478 = vld [vmem:[#allocation2 + $0x10] sm:$0xff]
    %v479 = vld [vmem:[#allocation2 + $0x18] sm:$0xff]
    %s480 = scalar_lea.vmem [#allocation8], 256
    %v481 = vld [vmem:[%s480] sm:$0xff]
    %v482 = vld [vmem:[%s480 + $0x8] sm:$0xff]
    %v483 = vld [vmem:[%s480 + $0x10] sm:$0xff]
    %v484 = vld [vmem:[%s480 + $0x18] sm:$0xff]
    %v485 = vld [vmem:[%s480 + $0x20] sm:$0xff]
    %v486 = vld [vmem:[%s480 + $0x28] sm:$0xff]
    %v487 = vld [vmem:[%s480 + $0x30] sm:$0xff]
    %v488 = vld [vmem:[%s480 + $0x38] sm:$0xff]
    %v489 = vld [vmem:[%s480 + $0x40] sm:$0xff]
    %v490 = vld [vmem:[%s480 + $0x48] sm:$0xff]
    %v491 = vld [vmem:[%s480 + $0x50] sm:$0xff]
    %v492 = vld [vmem:[%s480 + $0x58] sm:$0xff]
    %v493 = vld [vmem:[%s480 + $0x60] sm:$0xff]
    %v494 = vld [vmem:[%s480 + $0x68] sm:$0xff]
    %v495 = vld [vmem:[%s480 + $0x70] sm:$0xff]
    %v496 = vld [vmem:[%s480 + $0x78] sm:$0xff]
    %497 = vmatprep.subr.mxu0 0.0
    %498 = vmatpush1.msra.mxu0 %v481
    %499 = vmatprep.subr.mxu0 0.0
    %500 = vmatpush1.msra.mxu0 %v482
    %501 = vmatprep.subr.mxu0 0.0
    %502 = vmatpush1.msra.mxu0 %v483
    %503 = vmatprep.subr.mxu0 0.0
    %504 = vmatpush1.msra.mxu0 %v484
    %505 = vmatprep.subr.mxu0 0.0
    %506 = vmatpush1.msra.mxu0 %v485
    %507 = vmatprep.subr.mxu0 0.0
    %508 = vmatpush1.msra.mxu0 %v486
    %509 = vmatprep.subr.mxu0 0.0
    %510 = vmatpush1.msra.mxu0 %v487
    %511 = vmatprep.subr.mxu0 0.0
    %512 = vmatpush1.msra.mxu0 %v488
    %513 = vmatprep.subr.mxu0 0.0
    %514 = vmatpush1.msra.mxu0 %v489
    %515 = vmatprep.subr.mxu0 0.0
    %516 = vmatpush1.msra.mxu0 %v490
    %517 = vmatprep.subr.mxu0 0.0
    %518 = vmatpush1.msra.mxu0 %v491
    %519 = vmatprep.subr.mxu0 0.0
    %520 = vmatpush1.msra.mxu0 %v492
    %521 = vmatprep.subr.mxu0 0.0
    %522 = vmatpush1.msra.mxu0 %v493
    %523 = vmatprep.subr.mxu0 0.0
    %524 = vmatpush1.msra.mxu0 %v494
    %525 = vmatprep.subr.mxu0 0.0
    %526 = vmatpush1.msra.mxu0 %v495
    %527 = vmatprep.subr.mxu0 0.0
    %528 = vmatpush1.msra.mxu0 %v496
    %529 = vmatprep.subr.mxu0 0.0
    %530 = vmatpush1.msra.mxu0 0.0
    %531 = vmatprep.subr.mxu0 0.0
    %532 = vmatpush1.msra.mxu0 0.0
    %533 = vmatprep.subr.mxu0 0.0
    %534 = vmatpush1.msra.mxu0 0.0
    %535 = vmatprep.subr.mxu0 0.0
    %536 = vmatpush1.msra.mxu0 0.0
    %537 = vmatprep.subr.mxu0 0.0
    %538 = vmatpush1.msra.mxu0 0.0
    %539 = vmatprep.subr.mxu0 0.0
    %540 = vmatpush1.msra.mxu0 0.0
    %541 = vmatprep.subr.mxu0 0.0
    %542 = vmatpush1.msra.mxu0 0.0
    %543 = vmatprep.subr.mxu0 0.0
    %544 = vmatpush1.msra.mxu0 0.0
    %545 = vmatprep.subr.mxu0 0.0
    %546 = vmatpush1.msra.mxu0 0.0
    %547 = vmatprep.subr.mxu0 0.0
    %548 = vmatpush1.msra.mxu0 0.0
    %549 = vmatprep.subr.mxu0 0.0
    %550 = vmatpush1.msra.mxu0 0.0
    %551 = vmatprep.subr.mxu0 0.0
    %552 = vmatpush1.msra.mxu0 0.0
    %553 = vmatprep.subr.mxu0 0.0
    %554 = vmatpush1.msra.mxu0 0.0
    %555 = vmatprep.subr.mxu0 0.0
    %556 = vmatpush1.msra.mxu0 0.0
    %557 = vmatprep.subr.mxu0 0.0
    %558 = vmatpush1.msra.mxu0 0.0
    %559 = vmatprep.subr.mxu0 0.0
    %560 = vmatpush1.msra.mxu0 0.0
    %561 = vmatprep.mubr.f32.mxu0 0.0
    %562 = vmatmul.mubr.f32.gmra.mrb[0].mxu0 %v458
    %v563 = vpop.f32.mrb[0].mxu0
    %v564 = vadd.f32 0.0, %v563
    %v565 = vpop.f32.mrb[0].mxu0
    %566 = vmatprep.mubr.f32.mxu0 0.0
    %567 = vmatmul.mubr.f32.gmra.mrb[0].mxu0 %v463
    %v568 = vpop.f32.mrb[0].mxu0
    %v569 = vadd.f32 0.0, %v568
    %v570 = vpop.f32.mrb[0].mxu0
    %571 = vmatprep.mubr.f32.mxu0 0.0
    %572 = vmatmul.mubr.f32.gmra.mrb[0].mxu0 %v468
    %v573 = vpop.f32.mrb[0].mxu0
    %v574 = vadd.f32 0.0, %v573
    %v575 = vpop.f32.mrb[0].mxu0
    %576 = vmatprep.mubr.f32.mxu0 0.0
    %577 = vmatmul.mubr.f32.gmra.mrb[0].mxu0 %v473
    %v578 = vpop.f32.mrb[0].mxu0
    %v579 = vadd.f32 0.0, %v578
    %v580 = vpop.f32.mrb[0].mxu0
    %581 = vdwg.mxu0
    %v582 = vadd.f32 %v476, %v564
    %v583 = vadd.f32 %v477, %v569
    %v584 = vadd.f32 %v478, %v574
    %v585 = vadd.f32 %v479, %v579
    %586 = vst [vmem:[#allocation2] sm:$0xff] %v582
    %587 = vst [vmem:[#allocation2 + $0x8] sm:$0xff] %v583
    %588 = vst [vmem:[#allocation2 + $0x10] sm:$0xff] %v584
    %589 = vst [vmem:[#allocation2 + $0x18] sm:$0xff] %v585
    %s590 = scalar_lea.vmem [#allocation6], 32
    %v591 = vld [vmem:[%s590] sm:$0xff]
    %v592 = vld [vmem:[%s590 + $0x8] sm:$0xff]
    %v593 = vld [vmem:[%s590 + $0x10] sm:$0xff]
    %v594 = vld [vmem:[%s590 + $0x18] sm:$0xff]
    %v596 = vsel %vm179, %v591, 0
    %v599 = vsel %vm179, %v592, 0
    %v602 = vsel %vm179, %v593, 0
    %v605 = vsel %vm179, %v594, 0
    %607 = vmatprep.subr.mxu0 0.0
    %608 = vmatpush1.msra.mxu0 %v59
    %609 = vmatprep.subr.mxu0 0.0
    %610 = vmatpush1.msra.mxu0 %v60
    %611 = vmatprep.subr.mxu0 0.0
    %612 = vmatpush1.msra.mxu0 %v61
    %613 = vmatprep.subr.mxu0 0.0
    %614 = vmatpush1.msra.mxu0 %v62
    %615 = vmatprep.subr.mxu0 0.0
    %616 = vmatpush1.msra.mxu0 0.0
    %617 = vmatprep.subr.mxu0 0.0
    %618 = vmatpush1.msra.mxu0 0.0
    %619 = vmatprep.subr.mxu0 0.0
    %620 = vmatpush1.msra.mxu0 0.0
    %621 = vmatprep.subr.mxu0 0.0
    %622 = vmatpush1.msra.mxu0 0.0
    %623 = vmatprep.subr.mxu0 0.0
    %624 = vmatpush1.msra.mxu0 0.0
    %625 = vmatprep.subr.mxu0 0.0
    %626 = vmatpush1.msra.mxu0 0.0
    %627 = vmatprep.subr.mxu0 0.0
    %628 = vmatpush1.msra.mxu0 0.0
    %629 = vmatprep.subr.mxu0 0.0
    %630 = vmatpush1.msra.mxu0 0.0
    %631 = vmatprep.subr.mxu0 0.0
    %632 = vmatpush1.msra.mxu0 0.0
    %633 = vmatprep.subr.mxu0 0.0
    %634 = vmatpush1.msra.mxu0 0.0
    %635 = vmatprep.subr.mxu0 0.0
    %636 = vmatpush1.msra.mxu0 0.0
    %637 = vmatprep.subr.mxu0 0.0
    %638 = vmatpush1.msra.mxu0 0.0
    %639 = vmatprep.subr.mxu0 0.0
    %640 = vmatpush1.msra.mxu0 0.0
    %641 = vmatprep.subr.mxu0 0.0
    %642 = vmatpush1.msra.mxu0 0.0
    %643 = vmatprep.subr.mxu0 0.0
    %644 = vmatpush1.msra.mxu0 0.0
    %645 = vmatprep.subr.mxu0 0.0
    %646 = vmatpush1.msra.mxu0 0.0
    %647 = vmatprep.subr.mxu0 0.0
    %648 = vmatpush1.msra.mxu0 0.0
    %649 = vmatprep.subr.mxu0 0.0
    %650 = vmatpush1.msra.mxu0 0.0
    %651 = vmatprep.subr.mxu0 0.0
    %652 = vmatpush1.msra.mxu0 0.0
    %653 = vmatprep.subr.mxu0 0.0
    %654 = vmatpush1.msra.mxu0 0.0
    %655 = vmatprep.subr.mxu0 0.0
    %656 = vmatpush1.msra.mxu0 0.0
    %657 = vmatprep.subr.mxu0 0.0
    %658 = vmatpush1.msra.mxu0 0.0
    %659 = vmatprep.subr.mxu0 0.0
    %660 = vmatpush1.msra.mxu0 0.0
    %661 = vmatprep.subr.mxu0 0.0
    %662 = vmatpush1.msra.mxu0 0.0
    %663 = vmatprep.subr.mxu0 0.0
    %664 = vmatpush1.msra.mxu0 0.0
    %665 = vmatprep.subr.mxu0 0.0
    %666 = vmatpush1.msra.mxu0 0.0
    %667 = vmatprep.subr.mxu0 0.0
    %668 = vmatpush1.msra.mxu0 0.0
    %669 = vmatprep.subr.mxu0 0.0
    %670 = vmatpush1.msra.mxu0 0.0
    %671 = vmatprep.mubr.f32.mxu0 0.0
    %672 = vmatmul.mubr.f32.gmra.mrb[0].mxu0 %v596
    %v673 = vpop.f32.mrb[0].mxu0
    %v674 = vadd.f32 0.0, %v673
    %v675 = vpop.f32.mrb[0].mxu0
    %676 = vmatprep.mubr.f32.mxu0 0.0
    %677 = vmatmul.mubr.f32.gmra.mrb[0].mxu0 %v599
    %v678 = vpop.f32.mrb[0].mxu0
    %v679 = vadd.f32 0.0, %v678
    %v680 = vpop.f32.mrb[0].mxu0
    %681 = vmatprep.mubr.f32.mxu0 0.0
    %682 = vmatmul.mubr.f32.gmra.mrb[0].mxu0 %v602
    %v683 = vpop.f32.mrb[0].mxu0
    %v684 = vadd.f32 0.0, %v683
    %v685 = vpop.f32.mrb[0].mxu0
    %686 = vmatprep.mubr.f32.mxu0 0.0
    %687 = vmatmul.mubr.f32.gmra.mrb[0].mxu0 %v605
    %v688 = vpop.f32.mrb[0].mxu0
    %v689 = vadd.f32 0.0, %v688
    %v690 = vpop.f32.mrb[0].mxu0
    %691 = vdwg.mxu0
    %v692 = vld [vmem:[#allocation2] sm:$0xff]
    %v693 = vld [vmem:[#allocation2 + $0x8] sm:$0xff]
    %v694 = vld [vmem:[#allocation2 + $0x10] sm:$0xff]
    %v695 = vld [vmem:[#allocation2 + $0x18] sm:$0xff]
    %s696 = scalar_lea.vmem [#allocation8], 384
    %v697 = vld [vmem:[%s696] sm:$0xff]
    %v698 = vld [vmem:[%s696 + $0x8] sm:$0xff]
    %v699 = vld [vmem:[%s696 + $0x10] sm:$0xff]
    %v700 = vld [vmem:[%s696 + $0x18] sm:$0xff]
    %v701 = vld [vmem:[%s696 + $0x20] sm:$0xff]
    %v702 = vld [vmem:[%s696 + $0x28] sm:$0xff]
    %v703 = vld [vmem:[%s696 + $0x30] sm:$0xff]
    %v704 = vld [vmem:[%s696 + $0x38] sm:$0xff]
    %v705 = vld [vmem:[%s696 + $0x40] sm:$0xff]
    %v706 = vld [vmem:[%s696 + $0x48] sm:$0xff]
    %v707 = vld [vmem:[%s696 + $0x50] sm:$0xff]
    %v708 = vld [vmem:[%s696 + $0x58] sm:$0xff]
    %v709 = vld [vmem:[%s696 + $0x60] sm:$0xff]
    %v710 = vld [vmem:[%s696 + $0x68] sm:$0xff]
    %v711 = vld [vmem:[%s696 + $0x70] sm:$0xff]
    %v712 = vld [vmem:[%s696 + $0x78] sm:$0xff]
    %713 = vmatprep.subr.mxu0 0.0
    %714 = vmatpush1.msra.mxu0 %v697
    %715 = vmatprep.subr.mxu0 0.0
    %716 = vmatpush1.msra.mxu0 %v698
    %717 = vmatprep.subr.mxu0 0.0
    %718 = vmatpush1.msra.mxu0 %v699
    %719 = vmatprep.subr.mxu0 0.0
    %720 = vmatpush1.msra.mxu0 %v700
    %721 = vmatprep.subr.mxu0 0.0
    %722 = vmatpush1.msra.mxu0 %v701
    %723 = vmatprep.subr.mxu0 0.0
    %724 = vmatpush1.msra.mxu0 %v702
    %725 = vmatprep.subr.mxu0 0.0
    %726 = vmatpush1.msra.mxu0 %v703
    %727 = vmatprep.subr.mxu0 0.0
    %728 = vmatpush1.msra.mxu0 %v704
    %729 = vmatprep.subr.mxu0 0.0
    %730 = vmatpush1.msra.mxu0 %v705
    %731 = vmatprep.subr.mxu0 0.0
    %732 = vmatpush1.msra.mxu0 %v706
    %733 = vmatprep.subr.mxu0 0.0
    %734 = vmatpush1.msra.mxu0 %v707
    %735 = vmatprep.subr.mxu0 0.0
    %736 = vmatpush1.msra.mxu0 %v708
    %737 = vmatprep.subr.mxu0 0.0
    %738 = vmatpush1.msra.mxu0 %v709
    %739 = vmatprep.subr.mxu0 0.0
    %740 = vmatpush1.msra.mxu0 %v710
    %741 = vmatprep.subr.mxu0 0.0
    %742 = vmatpush1.msra.mxu0 %v711
    %743 = vmatprep.subr.mxu0 0.0
    %744 = vmatpush1.msra.mxu0 %v712
    %745 = vmatprep.subr.mxu0 0.0
    %746 = vmatpush1.msra.mxu0 0.0
    %747 = vmatprep.subr.mxu0 0.0
    %748 = vmatpush1.msra.mxu0 0.0
    %749 = vmatprep.subr.mxu0 0.0
    %750 = vmatpush1.msra.mxu0 0.0
    %751 = vmatprep.subr.mxu0 0.0
    %752 = vmatpush1.msra.mxu0 0.0
    %753 = vmatprep.subr.mxu0 0.0
    %754 = vmatpush1.msra.mxu0 0.0
    %755 = vmatprep.subr.mxu0 0.0
    %756 = vmatpush1.msra.mxu0 0.0
    %757 = vmatprep.subr.mxu0 0.0
    %758 = vmatpush1.msra.mxu0 0.0
    %759 = vmatprep.subr.mxu0 0.0
    %760 = vmatpush1.msra.mxu0 0.0
    %761 = vmatprep.subr.mxu0 0.0
    %762 = vmatpush1.msra.mxu0 0.0
    %763 = vmatprep.subr.mxu0 0.0
    %764 = vmatpush1.msra.mxu0 0.0
    %765 = vmatprep.subr.mxu0 0.0
    %766 = vmatpush1.msra.mxu0 0.0
    %767 = vmatprep.subr.mxu0 0.0
    %768 = vmatpush1.msra.mxu0 0.0
    %769 = vmatprep.subr.mxu0 0.0
    %770 = vmatpush1.msra.mxu0 0.0
    %771 = vmatprep.subr.mxu0 0.0
    %772 = vmatpush1.msra.mxu0 0.0
    %773 = vmatprep.subr.mxu0 0.0
    %774 = vmatpush1.msra.mxu0 0.0
    %775 = vmatprep.subr.mxu0 0.0
    %776 = vmatpush1.msra.mxu0 0.0
    %777 = vmatprep.mubr.f32.mxu0 0.0
    %778 = vmatmul.mubr.f32.gmra.mrb[0].mxu0 %v674
    %v779 = vpop.f32.mrb[0].mxu0
    %v780 = vadd.f32 0.0, %v779
    %v781 = vpop.f32.mrb[0].mxu0
    %782 = vmatprep.mubr.f32.mxu0 0.0
    %783 = vmatmul.mubr.f32.gmra.mrb[0].mxu0 %v679
    %v784 = vpop.f32.mrb[0].mxu0
    %v785 = vadd.f32 0.0, %v784
    %v786 = vpop.f32.mrb[0].mxu0
    %787 = vmatprep.mubr.f32.mxu0 0.0
    %788 = vmatmul.mubr.f32.gmra.mrb[0].mxu0 %v684
    %v789 = vpop.f32.mrb[0].mxu0
    %v790 = vadd.f32 0.0, %v789
    %v791 = vpop.f32.mrb[0].mxu0
    %792 = vmatprep.mubr.f32.mxu0 0.0
    %793 = vmatmul.mubr.f32.gmra.mrb[0].mxu0 %v689
    %v794 = vpop.f32.mrb[0].mxu0
    %v795 = vadd.f32 0.0, %v794
    %v796 = vpop.f32.mrb[0].mxu0
    %797 = vdwg.mxu0
    %v798 = vadd.f32 %v692, %v780
    %v799 = vadd.f32 %v693, %v785
    %v800 = vadd.f32 %v694, %v790
    %v801 = vadd.f32 %v695, %v795
    %802 = vst [vmem:[#allocation2] sm:$0xff] %v798
    %803 = vst [vmem:[#allocation2 + $0x8] sm:$0xff] %v799
    %804 = vst [vmem:[#allocation2 + $0x10] sm:$0xff] %v800
    %805 = vst [vmem:[#allocation2 + $0x18] sm:$0xff] %v801
    %806 = vmatprep.subr.mxu0 0.0
    %807 = vmatpush1.msra.mxu0 %v674
    %808 = vmatprep.subr.mxu0 0.0
    %809 = vmatpush1.msra.mxu0 %v679
    %810 = vmatprep.subr.mxu0 0.0
    %811 = vmatpush1.msra.mxu0 %v684
    %812 = vmatprep.subr.mxu0 0.0
    %813 = vmatpush1.msra.mxu0 %v689
    %814 = vmatprep.subr.mxu0 0.0
    %815 = vmatpush1.msra.mxu0 0.0
    %816 = vmatprep.subr.mxu0 0.0
    %817 = vmatpush1.msra.mxu0 0.0
    %818 = vmatprep.subr.mxu0 0.0
    %819 = vmatpush1.msra.mxu0 0.0
    %820 = vmatprep.subr.mxu0 0.0
    %821 = vmatpush1.msra.mxu0 0.0
    %822 = vmatprep.subr.mxu0 0.0
    %823 = vmatpush1.msra.mxu0 0.0
    %824 = vmatprep.subr.mxu0 0.0
    %825 = vmatpush1.msra.mxu0 0.0
    %826 = vmatprep.subr.mxu0 0.0
    %827 = vmatpush1.msra.mxu0 0.0
    %828 = vmatprep.subr.mxu0 0.0
    %829 = vmatpush1.msra.mxu0 0.0
    %830 = vmatprep.subr.mxu0 0.0
    %831 = vmatpush1.msra.mxu0 0.0
    %832 = vmatprep.subr.mxu0 0.0
    %833 = vmatpush1.msra.mxu0 0.0
    %834 = vmatprep.subr.mxu0 0.0
    %835 = vmatpush1.msra.mxu0 0.0
    %836 = vmatprep.subr.mxu0 0.0
    %837 = vmatpush1.msra.mxu0 0.0
    %838 = vmatprep.subr.mxu0 0.0
    %839 = vmatpush1.msra.mxu0 0.0
    %840 = vmatprep.subr.mxu0 0.0
    %841 = vmatpush1.msra.mxu0 0.0
    %842 = vmatprep.subr.mxu0 0.0
    %843 = vmatpush1.msra.mxu0 0.0
    %844 = vmatprep.subr.mxu0 0.0
    %845 = vmatpush1.msra.mxu0 0.0
    %846 = vmatprep.subr.mxu0 0.0
    %847 = vmatpush1.msra.mxu0 0.0
    %848 = vmatprep.subr.mxu0 0.0
    %849 = vmatpush1.msra.mxu0 0.0
    %850 = vmatprep.subr.mxu0 0.0
    %851 = vmatpush1.msra.mxu0 0.0
    %852 = vmatprep.subr.mxu0 0.0
    %853 = vmatpush1.msra.mxu0 0.0
    %854 = vmatprep.subr.mxu0 0.0
    %855 = vmatpush1.msra.mxu0 0.0
    %856 = vmatprep.subr.mxu0 0.0
    %857 = vmatpush1.msra.mxu0 0.0
    %858 = vmatprep.subr.mxu0 0.0
    %859 = vmatpush1.msra.mxu0 0.0
    %860 = vmatprep.subr.mxu0 0.0
    %861 = vmatpush1.msra.mxu0 0.0
    %862 = vmatprep.subr.mxu0 0.0
    %863 = vmatpush1.msra.mxu0 0.0
    %864 = vmatprep.subr.mxu0 0.0
    %865 = vmatpush1.msra.mxu0 0.0
    %866 = vmatprep.subr.mxu0 0.0
    %867 = vmatpush1.msra.mxu0 0.0
    %868 = vmatprep.subr.mxu0 0.0
    %869 = vmatpush1.msra.mxu0 0.0
    %870 = vmatprep.mubr.f32.mxu0 0.0
    %871 = vmatmul.mubr.f32.gmra.mrb[0].mxu0 %v596
    %v872 = vpop.f32.mrb[0].mxu0
    %v873 = vadd.f32 0.0, %v872
    %v874 = vpop.f32.mrb[0].mxu0
    %875 = vmatprep.mubr.f32.mxu0 0.0
    %876 = vmatmul.mubr.f32.gmra.mrb[0].mxu0 %v599
    %v877 = vpop.f32.mrb[0].mxu0
    %v878 = vadd.f32 0.0, %v877
    %v879 = vpop.f32.mrb[0].mxu0
    %880 = vmatprep.mubr.f32.mxu0 0.0
    %881 = vmatmul.mubr.f32.gmra.mrb[0].mxu0 %v602
    %v882 = vpop.f32.mrb[0].mxu0
    %v883 = vadd.f32 0.0, %v882
    %v884 = vpop.f32.mrb[0].mxu0
    %885 = vmatprep.mubr.f32.mxu0 0.0
    %886 = vmatmul.mubr.f32.gmra.mrb[0].mxu0 %v605
    %v887 = vpop.f32.mrb[0].mxu0
    %v888 = vadd.f32 0.0, %v887
    %v889 = vpop.f32.mrb[0].mxu0
    %890 = vdwg.mxu0
    %v891 = vld [vmem:[#allocation2] sm:$0xff]
    %v892 = vld [vmem:[#allocation2 + $0x8] sm:$0xff]
    %v893 = vld [vmem:[#allocation2 + $0x10] sm:$0xff]
    %v894 = vld [vmem:[#allocation2 + $0x18] sm:$0xff]
    %s895 = scalar_lea.vmem [#allocation8], 512
    %v896 = vld [vmem:[%s895] sm:$0xff]
    %v897 = vld [vmem:[%s895 + $0x8] sm:$0xff]
    %v898 = vld [vmem:[%s895 + $0x10] sm:$0xff]
    %v899 = vld [vmem:[%s895 + $0x18] sm:$0xff]
    %v900 = vld [vmem:[%s895 + $0x20] sm:$0xff]
    %v901 = vld [vmem:[%s895 + $0x28] sm:$0xff]
    %v902 = vld [vmem:[%s895 + $0x30] sm:$0xff]
    %v903 = vld [vmem:[%s895 + $0x38] sm:$0xff]
    %v904 = vld [vmem:[%s895 + $0x40] sm:$0xff]
    %v905 = vld [vmem:[%s895 + $0x48] sm:$0xff]
    %v906 = vld [vmem:[%s895 + $0x50] sm:$0xff]
    %v907 = vld [vmem:[%s895 + $0x58] sm:$0xff]
    %v908 = vld [vmem:[%s895 + $0x60] sm:$0xff]
    %v909 = vld [vmem:[%s895 + $0x68] sm:$0xff]
    %v910 = vld [vmem:[%s895 + $0x70] sm:$0xff]
    %v911 = vld [vmem:[%s895 + $0x78] sm:$0xff]
    %912 = vmatprep.subr.mxu0 0.0
    %913 = vmatpush1.msra.mxu0 %v896
    %914 = vmatprep.subr.mxu0 0.0
    %915 = vmatpush1.msra.mxu0 %v897
    %916 = vmatprep.subr.mxu0 0.0
    %917 = vmatpush1.msra.mxu0 %v898
    %918 = vmatprep.subr.mxu0 0.0
    %919 = vmatpush1.msra.mxu0 %v899
    %920 = vmatprep.subr.mxu0 0.0
    %921 = vmatpush1.msra.mxu0 %v900
    %922 = vmatprep.subr.mxu0 0.0
    %923 = vmatpush1.msra.mxu0 %v901
    %924 = vmatprep.subr.mxu0 0.0
    %925 = vmatpush1.msra.mxu0 %v902
    %926 = vmatprep.subr.mxu0 0.0
    %927 = vmatpush1.msra.mxu0 %v903
    %928 = vmatprep.subr.mxu0 0.0
    %929 = vmatpush1.msra.mxu0 %v904
    %930 = vmatprep.subr.mxu0 0.0
    %931 = vmatpush1.msra.mxu0 %v905
    %932 = vmatprep.subr.mxu0 0.0
    %933 = vmatpush1.msra.mxu0 %v906
    %934 = vmatprep.subr.mxu0 0.0
    %935 = vmatpush1.msra.mxu0 %v907
    %936 = vmatprep.subr.mxu0 0.0
    %937 = vmatpush1.msra.mxu0 %v908
    %938 = vmatprep.subr.mxu0 0.0
    %939 = vmatpush1.msra.mxu0 %v909
    %940 = vmatprep.subr.mxu0 0.0
    %941 = vmatpush1.msra.mxu0 %v910
    %942 = vmatprep.subr.mxu0 0.0
    %943 = vmatpush1.msra.mxu0 %v911
    %944 = vmatprep.subr.mxu0 0.0
    %945 = vmatpush1.msra.mxu0 0.0
    %946 = vmatprep.subr.mxu0 0.0
    %947 = vmatpush1.msra.mxu0 0.0
    %948 = vmatprep.subr.mxu0 0.0
    %949 = vmatpush1.msra.mxu0 0.0
    %950 = vmatprep.subr.mxu0 0.0
    %951 = vmatpush1.msra.mxu0 0.0
    %952 = vmatprep.subr.mxu0 0.0
    %953 = vmatpush1.msra.mxu0 0.0
    %954 = vmatprep.subr.mxu0 0.0
    %955 = vmatpush1.msra.mxu0 0.0
    %956 = vmatprep.subr.mxu0 0.0
    %957 = vmatpush1.msra.mxu0 0.0
    %958 = vmatprep.subr.mxu0 0.0
    %959 = vmatpush1.msra.mxu0 0.0
    %960 = vmatprep.subr.mxu0 0.0
    %961 = vmatpush1.msra.mxu0 0.0
    %962 = vmatprep.subr.mxu0 0.0
    %963 = vmatpush1.msra.mxu0 0.0
    %964 = vmatprep.subr.mxu0 0.0
    %965 = vmatpush1.msra.mxu0 0.0
    %966 = vmatprep.subr.mxu0 0.0
    %967 = vmatpush1.msra.mxu0 0.0
    %968 = vmatprep.subr.mxu0 0.0
    %969 = vmatpush1.msra.mxu0 0.0
    %970 = vmatprep.subr.mxu0 0.0
    %971 = vmatpush1.msra.mxu0 0.0
    %972 = vmatprep.subr.mxu0 0.0
    %973 = vmatpush1.msra.mxu0 0.0
    %974 = vmatprep.subr.mxu0 0.0
    %975 = vmatpush1.msra.mxu0 0.0
    %976 = vmatprep.mubr.f32.mxu0 0.0
    %977 = vmatmul.mubr.f32.gmra.mrb[0].mxu0 %v873
    %v978 = vpop.f32.mrb[0].mxu0
    %v979 = vadd.f32 0.0, %v978
    %v980 = vpop.f32.mrb[0].mxu0
    %981 = vmatprep.mubr.f32.mxu0 0.0
    %982 = vmatmul.mubr.f32.gmra.mrb[0].mxu0 %v878
    %v983 = vpop.f32.mrb[0].mxu0
    %v984 = vadd.f32 0.0, %v983
    %v985 = vpop.f32.mrb[0].mxu0
    %986 = vmatprep.mubr.f32.mxu0 0.0
    %987 = vmatmul.mubr.f32.gmra.mrb[0].mxu0 %v883
    %v988 = vpop.f32.mrb[0].mxu0
    %v989 = vadd.f32 0.0, %v988
    %v990 = vpop.f32.mrb[0].mxu0
    %991 = vmatprep.mubr.f32.mxu0 0.0
    %992 = vmatmul.mubr.f32.gmra.mrb[0].mxu0 %v888
    %v993 = vpop.f32.mrb[0].mxu0
    %v994 = vadd.f32 0.0, %v993
    %v995 = vpop.f32.mrb[0].mxu0
    %996 = vdwg.mxu0
    %v997 = vadd.f32 %v891, %v979
    %v998 = vadd.f32 %v892, %v984
    %v999 = vadd.f32 %v893, %v989
    %v1000 = vadd.f32 %v894, %v994
    %1001 = vst [vmem:[#allocation2] sm:$0xff] %v997
    %1002 = vst [vmem:[#allocation2 + $0x8] sm:$0xff] %v998
    %1003 = vst [vmem:[#allocation2 + $0x10] sm:$0xff] %v999
    %1004 = vst [vmem:[#allocation2 + $0x18] sm:$0xff] %v1000
    %s1005 = scalar_lea.vmem [#allocation6], 64
    %v1006 = vld [vmem:[%s1005] sm:$0xff]
    %v1007 = vld [vmem:[%s1005 + $0x8] sm:$0xff]
    %v1008 = vld [vmem:[%s1005 + $0x10] sm:$0xff]
    %v1009 = vld [vmem:[%s1005 + $0x18] sm:$0xff]
    %v1011 = vsel %vm179, %v1006, 0
    %v1014 = vsel %vm179, %v1007, 0
    %v1017 = vsel %vm179, %v1008, 0
    %v1020 = vsel %vm179, %v1009, 0
    %1022 = vmatprep.subr.mxu0 0.0
    %1023 = vmatpush1.msra.mxu0 %v59
    %1024 = vmatprep.subr.mxu0 0.0
    %1025 = vmatpush1.msra.mxu0 %v60
    %1026 = vmatprep.subr.mxu0 0.0
    %1027 = vmatpush1.msra.mxu0 %v61
    %1028 = vmatprep.subr.mxu0 0.0
    %1029 = vmatpush1.msra.mxu0 %v62
    %1030 = vmatprep.subr.mxu0 0.0
    %1031 = vmatpush1.msra.mxu0 0.0
    %1032 = vmatprep.subr.mxu0 0.0
    %1033 = vmatpush1.msra.mxu0 0.0
    %1034 = vmatprep.subr.mxu0 0.0
    %1035 = vmatpush1.msra.mxu0 0.0
    %1036 = vmatprep.subr.mxu0 0.0
    %1037 = vmatpush1.msra.mxu0 0.0
    %1038 = vmatprep.subr.mxu0 0.0
    %1039 = vmatpush1.msra.mxu0 0.0
    %1040 = vmatprep.subr.mxu0 0.0
    %1041 = vmatpush1.msra.mxu0 0.0
    %1042 = vmatprep.subr.mxu0 0.0
    %1043 = vmatpush1.msra.mxu0 0.0
    %1044 = vmatprep.subr.mxu0 0.0
    %1045 = vmatpush1.msra.mxu0 0.0
    %1046 = vmatprep.subr.mxu0 0.0
    %1047 = vmatpush1.msra.mxu0 0.0
    %1048 = vmatprep.subr.mxu0 0.0
    %1049 = vmatpush1.msra.mxu0 0.0
    %1050 = vmatprep.subr.mxu0 0.0
    %1051 = vmatpush1.msra.mxu0 0.0
    %1052 = vmatprep.subr.mxu0 0.0
    %1053 = vmatpush1.msra.mxu0 0.0
    %1054 = vmatprep.subr.mxu0 0.0
    %1055 = vmatpush1.msra.mxu0 0.0
    %1056 = vmatprep.subr.mxu0 0.0
    %1057 = vmatpush1.msra.mxu0 0.0
    %1058 = vmatprep.subr.mxu0 0.0
    %1059 = vmatpush1.msra.mxu0 0.0
    %1060 = vmatprep.subr.mxu0 0.0
    %1061 = vmatpush1.msra.mxu0 0.0
    %1062 = vmatprep.subr.mxu0 0.0
    %1063 = vmatpush1.msra.mxu0 0.0
    %1064 = vmatprep.subr.mxu0 0.0
    %1065 = vmatpush1.msra.mxu0 0.0
    %1066 = vmatprep.subr.mxu0 0.0
    %1067 = vmatpush1.msra.mxu0 0.0
    %1068 = vmatprep.subr.mxu0 0.0
    %1069 = vmatpush1.msra.mxu0 0.0
    %1070 = vmatprep.subr.mxu0 0.0
    %1071 = vmatpush1.msra.mxu0 0.0
    %1072 = vmatprep.subr.mxu0 0.0
    %1073 = vmatpush1.msra.mxu0 0.0
    %1074 = vmatprep.subr.mxu0 0.0
    %1075 = vmatpush1.msra.mxu0 0.0
    %1076 = vmatprep.subr.mxu0 0.0
    %1077 = vmatpush1.msra.mxu0 0.0
    %1078 = vmatprep.subr.mxu0 0.0
    %1079 = vmatpush1.msra.mxu0 0.0
    %1080 = vmatprep.subr.mxu0 0.0
    %1081 = vmatpush1.msra.mxu0 0.0
    %1082 = vmatprep.subr.mxu0 0.0
    %1083 = vmatpush1.msra.mxu0 0.0
    %1084 = vmatprep.subr.mxu0 0.0
    %1085 = vmatpush1.msra.mxu0 0.0
    %1086 = vmatprep.mubr.f32.mxu0 0.0
    %1087 = vmatmul.mubr.f32.gmra.mrb[0].mxu0 %v1011
    %v1088 = vpop.f32.mrb[0].mxu0
    %v1089 = vadd.f32 0.0, %v1088
    %v1090 = vpop.f32.mrb[0].mxu0
    %1091 = vmatprep.mubr.f32.mxu0 0.0
    %1092 = vmatmul.mubr.f32.gmra.mrb[0].mxu0 %v1014
    %v1093 = vpop.f32.mrb[0].mxu0
    %v1094 = vadd.f32 0.0, %v1093
    %v1095 = vpop.f32.mrb[0].mxu0
    %1096 = vmatprep.mubr.f32.mxu0 0.0
    %1097 = vmatmul.mubr.f32.gmra.mrb[0].mxu0 %v1017
    %v1098 = vpop.f32.mrb[0].mxu0
    %v1099 = vadd.f32 0.0, %v1098
    %v1100 = vpop.f32.mrb[0].mxu0
    %1101 = vmatprep.mubr.f32.mxu0 0.0
    %1102 = vmatmul.mubr.f32.gmra.mrb[0].mxu0 %v1020
    %v1103 = vpop.f32.mrb[0].mxu0
    %v1104 = vadd.f32 0.0, %v1103
    %v1105 = vpop.f32.mrb[0].mxu0
    %1106 = vdwg.mxu0
    %v1107 = vld [vmem:[#allocation2] sm:$0xff]
    %v1108 = vld [vmem:[#allocation2 + $0x8] sm:$0xff]
    %v1109 = vld [vmem:[#allocation2 + $0x10] sm:$0xff]
    %v1110 = vld [vmem:[#allocation2 + $0x18] sm:$0xff]
    %s1111 = scalar_lea.vmem [#allocation8], 640
    %v1112 = vld [vmem:[%s1111] sm:$0xff]
    %v1113 = vld [vmem:[%s1111 + $0x8] sm:$0xff]
    %v1114 = vld [vmem:[%s1111 + $0x10] sm:$0xff]
    %v1115 = vld [vmem:[%s1111 + $0x18] sm:$0xff]
    %v1116 = vld [vmem:[%s1111 + $0x20] sm:$0xff]
    %v1117 = vld [vmem:[%s1111 + $0x28] sm:$0xff]
    %v1118 = vld [vmem:[%s1111 + $0x30] sm:$0xff]
    %v1119 = vld [vmem:[%s1111 + $0x38] sm:$0xff]
    %v1120 = vld [vmem:[%s1111 + $0x40] sm:$0xff]
    %v1121 = vld [vmem:[%s1111 + $0x48] sm:$0xff]
    %v1122 = vld [vmem:[%s1111 + $0x50] sm:$0xff]
    %v1123 = vld [vmem:[%s1111 + $0x58] sm:$0xff]
    %v1124 = vld [vmem:[%s1111 + $0x60] sm:$0xff]
    %v1125 = vld [vmem:[%s1111 + $0x68] sm:$0xff]
    %v1126 = vld [vmem:[%s1111 + $0x70] sm:$0xff]
    %v1127 = vld [vmem:[%s1111 + $0x78] sm:$0xff]
    %1128 = vmatprep.subr.mxu0 0.0
    %1129 = vmatpush1.msra.mxu0 %v1112
    %1130 = vmatprep.subr.mxu0 0.0
    %1131 = vmatpush1.msra.mxu0 %v1113
    %1132 = vmatprep.subr.mxu0 0.0
    %1133 = vmatpush1.msra.mxu0 %v1114
    %1134 = vmatprep.subr.mxu0 0.0
    %1135 = vmatpush1.msra.mxu0 %v1115
    %1136 = vmatprep.subr.mxu0 0.0
    %1137 = vmatpush1.msra.mxu0 %v1116
    %1138 = vmatprep.subr.mxu0 0.0
    %1139 = vmatpush1.msra.mxu0 %v1117
    %1140 = vmatprep.subr.mxu0 0.0
    %1141 = vmatpush1.msra.mxu0 %v1118
    %1142 = vmatprep.subr.mxu0 0.0
    %1143 = vmatpush1.msra.mxu0 %v1119
    %1144 = vmatprep.subr.mxu0 0.0
    %1145 = vmatpush1.msra.mxu0 %v1120
    %1146 = vmatprep.subr.mxu0 0.0
    %1147 = vmatpush1.msra.mxu0 %v1121
    %1148 = vmatprep.subr.mxu0 0.0
    %1149 = vmatpush1.msra.mxu0 %v1122
    %1150 = vmatprep.subr.mxu0 0.0
    %1151 = vmatpush1.msra.mxu0 %v1123
    %1152 = vmatprep.subr.mxu0 0.0
    %1153 = vmatpush1.msra.mxu0 %v1124
    %1154 = vmatprep.subr.mxu0 0.0
    %1155 = vmatpush1.msra.mxu0 %v1125
    %1156 = vmatprep.subr.mxu0 0.0
    %1157 = vmatpush1.msra.mxu0 %v1126
    %1158 = vmatprep.subr.mxu0 0.0
    %1159 = vmatpush1.msra.mxu0 %v1127
    %1160 = vmatprep.subr.mxu0 0.0
    %1161 = vmatpush1.msra.mxu0 0.0
    %1162 = vmatprep.subr.mxu0 0.0
    %1163 = vmatpush1.msra.mxu0 0.0
    %1164 = vmatprep.subr.mxu0 0.0
    %1165 = vmatpush1.msra.mxu0 0.0
    %1166 = vmatprep.subr.mxu0 0.0
    %1167 = vmatpush1.msra.mxu0 0.0
    %1168 = vmatprep.subr.mxu0 0.0
    %1169 = vmatpush1.msra.mxu0 0.0
    %1170 = vmatprep.subr.mxu0 0.0
    %1171 = vmatpush1.msra.mxu0 0.0
    %1172 = vmatprep.subr.mxu0 0.0
    %1173 = vmatpush1.msra.mxu0 0.0
    %1174 = vmatprep.subr.mxu0 0.0
    %1175 = vmatpush1.msra.mxu0 0.0
    %1176 = vmatprep.subr.mxu0 0.0
    %1177 = vmatpush1.msra.mxu0 0.0
    %1178 = vmatprep.subr.mxu0 0.0
    %1179 = vmatpush1.msra.mxu0 0.0
    %1180 = vmatprep.subr.mxu0 0.0
    %1181 = vmatpush1.msra.mxu0 0.0
    %1182 = vmatprep.subr.mxu0 0.0
    %1183 = vmatpush1.msra.mxu0 0.0
    %1184 = vmatprep.subr.mxu0 0.0
    %1185 = vmatpush1.msra.mxu0 0.0
    %1186 = vmatprep.subr.mxu0 0.0
    %1187 = vmatpush1.msra.mxu0 0.0
    %1188 = vmatprep.subr.mxu0 0.0
    %1189 = vmatpush1.msra.mxu0 0.0
    %1190 = vmatprep.subr.mxu0 0.0
    %1191 = vmatpush1.msra.mxu0 0.0
    %1192 = vmatprep.mubr.f32.mxu0 0.0
    %1193 = vmatmul.mubr.f32.gmra.mrb[0].mxu0 %v1089
    %v1194 = vpop.f32.mrb[0].mxu0
    %v1195 = vadd.f32 0.0, %v1194
    %v1196 = vpop.f32.mrb[0].mxu0
    %1197 = vmatprep.mubr.f32.mxu0 0.0
    %1198 = vmatmul.mubr.f32.gmra.mrb[0].mxu0 %v1094
    %v1199 = vpop.f32.mrb[0].mxu0
    %v1200 = vadd.f32 0.0, %v1199
    %v1201 = vpop.f32.mrb[0].mxu0
    %1202 = vmatprep.mubr.f32.mxu0 0.0
    %1203 = vmatmul.mubr.f32.gmra.mrb[0].mxu0 %v1099
    %v1204 = vpop.f32.mrb[0].mxu0
    %v1205 = vadd.f32 0.0, %v1204
    %v1206 = vpop.f32.mrb[0].mxu0
    %1207 = vmatprep.mubr.f32.mxu0 0.0
    %1208 = vmatmul.mubr.f32.gmra.mrb[0].mxu0 %v1104
    %v1209 = vpop.f32.mrb[0].mxu0
    %v1210 = vadd.f32 0.0, %v1209
    %v1211 = vpop.f32.mrb[0].mxu0
    %1212 = vdwg.mxu0
    %v1213 = vadd.f32 %v1107, %v1195
    %v1214 = vadd.f32 %v1108, %v1200
    %v1215 = vadd.f32 %v1109, %v1205
    %v1216 = vadd.f32 %v1110, %v1210
    %1217 = vst [vmem:[#allocation2] sm:$0xff] %v1213
    %1218 = vst [vmem:[#allocation2 + $0x8] sm:$0xff] %v1214
    %1219 = vst [vmem:[#allocation2 + $0x10] sm:$0xff] %v1215
    %1220 = vst [vmem:[#allocation2 + $0x18] sm:$0xff] %v1216
    %1221 = vmatprep.subr.mxu0 0.0
    %1222 = vmatpush1.msra.mxu0 %v1089
    %1223 = vmatprep.subr.mxu0 0.0
    %1224 = vmatpush1.msra.mxu0 %v1094
    %1225 = vmatprep.subr.mxu0 0.0
    %1226 = vmatpush1.msra.mxu0 %v1099
    %1227 = vmatprep.subr.mxu0 0.0
    %1228 = vmatpush1.msra.mxu0 %v1104
    %1229 = vmatprep.subr.mxu0 0.0
    %1230 = vmatpush1.msra.mxu0 0.0
    %1231 = vmatprep.subr.mxu0 0.0
    %1232 = vmatpush1.msra.mxu0 0.0
    %1233 = vmatprep.subr.mxu0 0.0
    %1234 = vmatpush1.msra.mxu0 0.0
    %1235 = vmatprep.subr.mxu0 0.0
    %1236 = vmatpush1.msra.mxu0 0.0
    %1237 = vmatprep.subr.mxu0 0.0
    %1238 = vmatpush1.msra.mxu0 0.0
    %1239 = vmatprep.subr.mxu0 0.0
    %1240 = vmatpush1.msra.mxu0 0.0
    %1241 = vmatprep.subr.mxu0 0.0
    %1242 = vmatpush1.msra.mxu0 0.0
    %1243 = vmatprep.subr.mxu0 0.0
    %1244 = vmatpush1.msra.mxu0 0.0
    %1245 = vmatprep.subr.mxu0 0.0
    %1246 = vmatpush1.msra.mxu0 0.0
    %1247 = vmatprep.subr.mxu0 0.0
    %1248 = vmatpush1.msra.mxu0 0.0
    %1249 = vmatprep.subr.mxu0 0.0
    %1250 = vmatpush1.msra.mxu0 0.0
    %1251 = vmatprep.subr.mxu0 0.0
    %1252 = vmatpush1.msra.mxu0 0.0
    %1253 = vmatprep.subr.mxu0 0.0
    %1254 = vmatpush1.msra.mxu0 0.0
    %1255 = vmatprep.subr.mxu0 0.0
    %1256 = vmatpush1.msra.mxu0 0.0
    %1257 = vmatprep.subr.mxu0 0.0
    %1258 = vmatpush1.msra.mxu0 0.0
    %1259 = vmatprep.subr.mxu0 0.0
    %1260 = vmatpush1.msra.mxu0 0.0
    %1261 = vmatprep.subr.mxu0 0.0
    %1262 = vmatpush1.msra.mxu0 0.0
    %1263 = vmatprep.subr.mxu0 0.0
    %1264 = vmatpush1.msra.mxu0 0.0
    %1265 = vmatprep.subr.mxu0 0.0
    %1266 = vmatpush1.msra.mxu0 0.0
    %1267 = vmatprep.subr.mxu0 0.0
    %1268 = vmatpush1.msra.mxu0 0.0
    %1269 = vmatprep.subr.mxu0 0.0
    %1270 = vmatpush1.msra.mxu0 0.0
    %1271 = vmatprep.subr.mxu0 0.0
    %1272 = vmatpush1.msra.mxu0 0.0
    %1273 = vmatprep.subr.mxu0 0.0
    %1274 = vmatpush1.msra.mxu0 0.0
    %1275 = vmatprep.subr.mxu0 0.0
    %1276 = vmatpush1.msra.mxu0 0.0
    %1277 = vmatprep.subr.mxu0 0.0
    %1278 = vmatpush1.msra.mxu0 0.0
    %1279 = vmatprep.subr.mxu0 0.0
    %1280 = vmatpush1.msra.mxu0 0.0
    %1281 = vmatprep.subr.mxu0 0.0
    %1282 = vmatpush1.msra.mxu0 0.0
    %1283 = vmatprep.subr.mxu0 0.0
    %1284 = vmatpush1.msra.mxu0 0.0
    %1285 = vmatprep.mubr.f32.mxu0 0.0
    %1286 = vmatmul.mubr.f32.gmra.mrb[0].mxu0 %v1011
    %v1287 = vpop.f32.mrb[0].mxu0
    %v1288 = vadd.f32 0.0, %v1287
    %v1289 = vpop.f32.mrb[0].mxu0
    %1290 = vmatprep.mubr.f32.mxu0 0.0
    %1291 = vmatmul.mubr.f32.gmra.mrb[0].mxu0 %v1014
    %v1292 = vpop.f32.mrb[0].mxu0
    %v1293 = vadd.f32 0.0, %v1292
    %v1294 = vpop.f32.mrb[0].mxu0
    %1295 = vmatprep.mubr.f32.mxu0 0.0
    %1296 = vmatmul.mubr.f32.gmra.mrb[0].mxu0 %v1017
    %v1297 = vpop.f32.mrb[0].mxu0
    %v1298 = vadd.f32 0.0, %v1297
    %v1299 = vpop.f32.mrb[0].mxu0
    %1300 = vmatprep.mubr.f32.mxu0 0.0
    %1301 = vmatmul.mubr.f32.gmra.mrb[0].mxu0 %v1020
    %v1302 = vpop.f32.mrb[0].mxu0
    %v1303 = vadd.f32 0.0, %v1302
    %v1304 = vpop.f32.mrb[0].mxu0
    %1305 = vdwg.mxu0
    %v1306 = vld [vmem:[#allocation2] sm:$0xff]
    %v1307 = vld [vmem:[#allocation2 + $0x8] sm:$0xff]
    %v1308 = vld [vmem:[#allocation2 + $0x10] sm:$0xff]
    %v1309 = vld [vmem:[#allocation2 + $0x18] sm:$0xff]
    %s1310 = scalar_lea.vmem [#allocation8], 768
    %v1311 = vld [vmem:[%s1310] sm:$0xff]
    %v1312 = vld [vmem:[%s1310 + $0x8] sm:$0xff]
    %v1313 = vld [vmem:[%s1310 + $0x10] sm:$0xff]
    %v1314 = vld [vmem:[%s1310 + $0x18] sm:$0xff]
    %v1315 = vld [vmem:[%s1310 + $0x20] sm:$0xff]
    %v1316 = vld [vmem:[%s1310 + $0x28] sm:$0xff]
    %v1317 = vld [vmem:[%s1310 + $0x30] sm:$0xff]
    %v1318 = vld [vmem:[%s1310 + $0x38] sm:$0xff]
    %v1319 = vld [vmem:[%s1310 + $0x40] sm:$0xff]
    %v1320 = vld [vmem:[%s1310 + $0x48] sm:$0xff]
    %v1321 = vld [vmem:[%s1310 + $0x50] sm:$0xff]
    %v1322 = vld [vmem:[%s1310 + $0x58] sm:$0xff]
    %v1323 = vld [vmem:[%s1310 + $0x60] sm:$0xff]
    %v1324 = vld [vmem:[%s1310 + $0x68] sm:$0xff]
    %v1325 = vld [vmem:[%s1310 + $0x70] sm:$0xff]
    %v1326 = vld [vmem:[%s1310 + $0x78] sm:$0xff]
    %1327 = vmatprep.subr.mxu0 0.0
    %1328 = vmatpush1.msra.mxu0 %v1311
    %1329 = vmatprep.subr.mxu0 0.0
    %1330 = vmatpush1.msra.mxu0 %v1312
    %1331 = vmatprep.subr.mxu0 0.0
    %1332 = vmatpush1.msra.mxu0 %v1313
    %1333 = vmatprep.subr.mxu0 0.0
    %1334 = vmatpush1.msra.mxu0 %v1314
    %1335 = vmatprep.subr.mxu0 0.0
    %1336 = vmatpush1.msra.mxu0 %v1315
    %1337 = vmatprep.subr.mxu0 0.0
    %1338 = vmatpush1.msra.mxu0 %v1316
    %1339 = vmatprep.subr.mxu0 0.0
    %1340 = vmatpush1.msra.mxu0 %v1317
    %1341 = vmatprep.subr.mxu0 0.0
    %1342 = vmatpush1.msra.mxu0 %v1318
    %1343 = vmatprep.subr.mxu0 0.0
    %1344 = vmatpush1.msra.mxu0 %v1319
    %1345 = vmatprep.subr.mxu0 0.0
    %1346 = vmatpush1.msra.mxu0 %v1320
    %1347 = vmatprep.subr.mxu0 0.0
    %1348 = vmatpush1.msra.mxu0 %v1321
    %1349 = vmatprep.subr.mxu0 0.0
    %1350 = vmatpush1.msra.mxu0 %v1322
    %1351 = vmatprep.subr.mxu0 0.0
    %1352 = vmatpush1.msra.mxu0 %v1323
    %1353 = vmatprep.subr.mxu0 0.0
    %1354 = vmatpush1.msra.mxu0 %v1324
    %1355 = vmatprep.subr.mxu0 0.0
    %1356 = vmatpush1.msra.mxu0 %v1325
    %1357 = vmatprep.subr.mxu0 0.0
    %1358 = vmatpush1.msra.mxu0 %v1326
    %1359 = vmatprep.subr.mxu0 0.0
    %1360 = vmatpush1.msra.mxu0 0.0
    %1361 = vmatprep.subr.mxu0 0.0
    %1362 = vmatpush1.msra.mxu0 0.0
    %1363 = vmatprep.subr.mxu0 0.0
    %1364 = vmatpush1.msra.mxu0 0.0
    %1365 = vmatprep.subr.mxu0 0.0
    %1366 = vmatpush1.msra.mxu0 0.0
    %1367 = vmatprep.subr.mxu0 0.0
    %1368 = vmatpush1.msra.mxu0 0.0
    %1369 = vmatprep.subr.mxu0 0.0
    %1370 = vmatpush1.msra.mxu0 0.0
    %1371 = vmatprep.subr.mxu0 0.0
    %1372 = vmatpush1.msra.mxu0 0.0
    %1373 = vmatprep.subr.mxu0 0.0
    %1374 = vmatpush1.msra.mxu0 0.0
    %1375 = vmatprep.subr.mxu0 0.0
    %1376 = vmatpush1.msra.mxu0 0.0
    %1377 = vmatprep.subr.mxu0 0.0
    %1378 = vmatpush1.msra.mxu0 0.0
    %1379 = vmatprep.subr.mxu0 0.0
    %1380 = vmatpush1.msra.mxu0 0.0
    %1381 = vmatprep.subr.mxu0 0.0
    %1382 = vmatpush1.msra.mxu0 0.0
    %1383 = vmatprep.subr.mxu0 0.0
    %1384 = vmatpush1.msra.mxu0 0.0
    %1385 = vmatprep.subr.mxu0 0.0
    %1386 = vmatpush1.msra.mxu0 0.0
    %1387 = vmatprep.subr.mxu0 0.0
    %1388 = vmatpush1.msra.mxu0 0.0
    %1389 = vmatprep.subr.mxu0 0.0
    %1390 = vmatpush1.msra.mxu0 0.0
    %1391 = vmatprep.mubr.f32.mxu0 0.0
    %1392 = vmatmul.mubr.f32.gmra.mrb[0].mxu0 %v1288
    %v1393 = vpop.f32.mrb[0].mxu0
    %v1394 = vadd.f32 0.0, %v1393
    %v1395 = vpop.f32.mrb[0].mxu0
    %1396 = vmatprep.mubr.f32.mxu0 0.0
    %1397 = vmatmul.mubr.f32.gmra.mrb[0].mxu0 %v1293
    %v1398 = vpop.f32.mrb[0].mxu0
    %v1399 = vadd.f32 0.0, %v1398
    %v1400 = vpop.f32.mrb[0].mxu0
    %1401 = vmatprep.mubr.f32.mxu0 0.0
    %1402 = vmatmul.mubr.f32.gmra.mrb[0].mxu0 %v1298
    %v1403 = vpop.f32.mrb[0].mxu0
    %v1404 = vadd.f32 0.0, %v1403
    %v1405 = vpop.f32.mrb[0].mxu0
    %1406 = vmatprep.mubr.f32.mxu0 0.0
    %1407 = vmatmul.mubr.f32.gmra.mrb[0].mxu0 %v1303
    %v1408 = vpop.f32.mrb[0].mxu0
    %v1409 = vadd.f32 0.0, %v1408
    %v1410 = vpop.f32.mrb[0].mxu0
    %1411 = vdwg.mxu0
    %v1412 = vadd.f32 %v1306, %v1394
    %v1413 = vadd.f32 %v1307, %v1399
    %v1414 = vadd.f32 %v1308, %v1404
    %v1415 = vadd.f32 %v1309, %v1409
    %1416 = vst [vmem:[#allocation2] sm:$0xff] %v1412
    %1417 = vst [vmem:[#allocation2 + $0x8] sm:$0xff] %v1413
    %1418 = vst [vmem:[#allocation2 + $0x10] sm:$0xff] %v1414
    %1419 = vst [vmem:[#allocation2 + $0x18] sm:$0xff] %v1415
    %v1420 = vld [vmem:[#allocation2] sm:$0xff]
    %v1421 = vld [vmem:[#allocation2 + $0x8] sm:$0xff]
    %v1422 = vld [vmem:[#allocation2 + $0x10] sm:$0xff]
    %v1423 = vld [vmem:[#allocation2 + $0x18] sm:$0xff]
    %1424 = vst [vmem:[#allocation9] sm:$0xff] %v1420
    %1425 = vst [vmem:[#allocation9 + $0x8] sm:$0xff] %v1421
    %1426 = vst [vmem:[#allocation9 + $0x10] sm:$0xff] %v1422
    %1427 = vst [vmem:[#allocation9 + $0x18] sm:$0xff] %v1423
    // Predicated region
    $region30: #{tpu_custom_call.1} parent=1 // pred_check
      _
    $region31: #{tpu_custom_call.1} parent=1 // pred_check_branch
      %1429 = sbr.rel (0) target = $region33
    $region32: #{tpu_custom_call.1} parent=1 // pred_region
      %s1431 = ssub.s32 512, 512
      %1432 = vsyncadd [#allocation5], %s1431
      %s1433 = sshll.u32 [#allocation9], 4
      %s1434 = int_to_ptr.vmem [resolvable:$true] %s1433
      %1439 = dma.vmem_to_hbm [thread:$0]  %s1434, 512, %s4, [#allocation5], 128, 128, 8
    $region33: #{tpu_custom_call.1} parent=1 // pred_fallthru
      _
    // Predicated region
    $region34: #{tpu_custom_call.1} parent=1 // pred_check
      _
    $region35: #{tpu_custom_call.1} parent=1 // pred_check_branch
      %1441 = sbr.rel (0) target = $region37
    $region36: #{tpu_custom_call.1} parent=1 // pred_region
      %1442 = dma.done [#allocation5], 512
    $region37: #{tpu_custom_call.1} parent=1 // pred_fallthru
      _
    %1443 = vsyncpa [#allocation4], 1
    %1444 = vsyncpa [#allocation7], 1
    %1445 = vsyncpa [#allocation5], 1

</llo_original>
